<compile_context>
chip_gen: v7x
topology: tpu7x:2x2x1
jax: 0.10.0
libtpu: 0.0.40
codegen_flags: <defaults>
</compile_context>

<pallas_src>
import functools

import jax
import jax.numpy as jnp
from jax import lax
from jax.experimental import pallas as pl
from jax.experimental.pallas import tpu as pltpu


def _round_up(x, m):
  return (x + m - 1) // m * m


# ----------------------------------------------------------------------------
# Fused weight layout helper
#   gate blocks of width 2H along the 8H axis, gate order [i, f, g, o];
#   inside each 2H block: cols [0:H] = forward dir, cols [H:2H] = backward dir.
# ----------------------------------------------------------------------------
def _fuse_dirs(wf_t, wb_t, H):
  """wf_t, wb_t: (D, 4H) in PyTorch [i,f,g,o] gate order -> (D, 8H) fused."""
  D = wf_t.shape[0]
  wf4 = wf_t.reshape(D, 4, H)
  wb4 = wb_t.reshape(D, 4, H)
  return jnp.concatenate([wf4, wb4], axis=-1).reshape(D, 8 * H)


# ----------------------------------------------------------------------------
# Pallas kernel: fused bidirectional LSTM recurrence + Linear + softmax
# (one batch tile of Nt rows per grid step; rows within a tile are time-major)
# ----------------------------------------------------------------------------
def _bilstm_tagger_kernel(
    x_ref,        # (W*Nt, 2Ew) bf16; row t*Nt+n = [x(t,n) | x(W-1-t,n)]
    wih_ref,      # (2Ew, 8H)   bf16 fused block-diag input weights
    b_ref,        # (1, 8H)     f32 fused bias (b_ih + b_hh, both directions)
    whh_ref,      # (2H, 8H)    bf16 fused block-diag recurrent weights
    wlin_f_ref,   # (2H, Tp)    f32 Linear^T, backward rows + pad cols zeroed
    wlin_b_ref,   # (2H, Tp)    f32 Linear^T, forward rows + pad cols zeroed
    blin_ref,     # (1, Tp)     f32 Linear bias, pad cols = -1e30
    out_ref,      # (W*Nt, Tp)  f32 softmax tag probs, time-major
    gin_ref,      # scratch (W*Nt, 8H) f32: precomputed input gates
    hf_ref,       # scratch (W*Nt, 2H) f32: step states keyed by FORWARD time
    hb_ref,       # scratch (W*Nt, 2H) f32: step states keyed by BACKWARD time
    *, seq_len, batch_tile,
):
  W, Nt = seq_len, batch_tile
  H2 = whh_ref.shape[0]          # 2H (also the width of each fused gate block)

  # ---- one-time work, hoisted out of the recurrence ------------------------
  whh = whh_ref[...]             # bf16, lives on the latency-critical chain
  # Input gates for every timestep of both directions in one batched matmul,
  # spilled to VMEM scratch so the unrolled recurrence only keeps 1 step live.
  gin_ref[...] = (
      jnp.dot(x_ref[...], wih_ref[...], preferred_element_type=jnp.float32)
      + b_ref[...]
  )                                                             # (W*Nt, 8H) f32

  # ---- fused fwd+bwd recurrence ---------------------------------------------
  def step(s, carry):
    h, c = carry                                                # f32 (Nt, 2H)
    base = pl.multiple_of(s * Nt, Nt)
    gates = gin_ref[pl.ds(base, Nt), :] + jnp.dot(
        h.astype(whh.dtype), whh, preferred_element_type=jnp.float32)
    # PyTorch gate order i, f, g, o; each slice is a full 2H(=128)-lane block.
    i = jax.nn.sigmoid(gates[:, 0 * H2:1 * H2])
    f = jax.nn.sigmoid(gates[:, 1 * H2:2 * H2])
    g = jnp.tanh(gates[:, 2 * H2:3 * H2])
    o = jax.nn.sigmoid(gates[:, 3 * H2:4 * H2])
    c = f * c + i * g
    h = o * jnp.tanh(c)
    # Full-tile (Nt = multiple of 8 sublanes) stores under both time
    # indexings; the irrelevant half of each row is masked later by the
    # zero-padded wlin halves.
    hf_ref[pl.ds(base, Nt), :] = h
    hb_ref[pl.ds(pl.multiple_of((W - 1 - s) * Nt, Nt), Nt), :] = h
    return h, c

  h0 = jnp.zeros((Nt, H2), jnp.float32)                         # [h_f | h_b]
  lax.fori_loop(0, W, step, (h0, h0), unroll=True)

  # ---- Linear + softmax tail (lane-dense Tp=128 output, no concat/reshape) --
  logits = (
      jnp.dot(hf_ref[...], wlin_f_ref[...], preferred_element_type=jnp.float32)
      + jnp.dot(hb_ref[...], wlin_b_ref[...], preferred_element_type=jnp.float32)
      + blin_ref[...]
  )                                                             # (W*Nt, Tp)
  m = jnp.max(logits, axis=-1, keepdims=True)
  e = jnp.exp(logits - m)                                       # pad cols -> 0
  denom = jnp.sum(e, axis=-1, keepdims=True)
  out_ref[...] = e * pl.reciprocal(denom, approx=True)


# ----------------------------------------------------------------------------
# Wrapper (glue: embedding gather, batch pad/tile, layout plumbing, pallas_call)
# ----------------------------------------------------------------------------
@jax.jit
def pynet_forward(words, params):
  """words: (N, W) int32 token ids -> (N, W, T) tag probabilities."""
  N, W = words.shape
  Ew = params["embed"].shape[1]
  H2 = params["whh_fused"].shape[0]        # 2H
  Tp = params["wlin_fpad"].shape[1]        # lane-dense padded tag dim (128)
  T = params["blin"].shape[1]              # real tag count

  # Batch tile: sublane-dense (multiple of 8 rows per recurrent matmul).
  # TODO(synk): for production batches raise Nt toward 128-256 and re-budget
  #             VMEM per generation (v7x 64 MiB phys / 32 MiB scoped default,
  #             v5e 16 MiB scoped default) via CompilerParams.vmem_limit_bytes.
  Nt = min(128, _round_up(N, 8))
  Np = _round_up(N, Nt)
  G = Np // Nt

  # Embedding gather directly in time-major order (no post-gather relayout);
  # inference-mode dropout is the identity.
  # TODO(synk): for large vocab, gather in-kernel (HBM table via pl.ANY +
  #             scalar-prefetched ids) instead of materializing emb in HBM.
  emb_tm = jnp.take(params["embed"], words.T, axis=0).astype(jnp.float32)
  emb_tm = jnp.pad(emb_tm, ((0, 0), (0, Np - N), (0, 0)))       # (W, Np, Ew)
  # Row layout [x(t) | x(W-1-t)] so one matmul yields both directions' input
  # gates (at Ew=8 the duplication is cheaper than a per-step lane select).
  x_cat = jnp.concatenate([emb_tm, emb_tm[::-1]], axis=-1)      # (W, Np, 2Ew)
  # Tile layout (G, W*Nt, 2Ew); rows within a tile are time-major (t*Nt + n).
  x_g = (x_cat.reshape(W, G, Nt, 2 * Ew)
              .transpose(1, 0, 2, 3)
              .reshape(G, W * Nt, 2 * Ew)
              .astype(jnp.bfloat16))

  kernel = functools.partial(_bilstm_tagger_kernel, seq_len=W, batch_tile=Nt)
  out_g = pl.pallas_call(
      kernel,
      out_shape=jax.ShapeDtypeStruct((G, W * Nt, Tp), jnp.float32),
      grid=(G,),
      in_specs=[
          pl.BlockSpec((None, W * Nt, 2 * Ew), lambda g: (g, 0, 0)),
          pl.BlockSpec(params["wih_fused"].shape, lambda g: (0, 0)),
          pl.BlockSpec(params["b_fused"].shape, lambda g: (0, 0)),
          pl.BlockSpec(params["whh_fused"].shape, lambda g: (0, 0)),
          pl.BlockSpec(params["wlin_fpad"].shape, lambda g: (0, 0)),
          pl.BlockSpec(params["wlin_bpad"].shape, lambda g: (0, 0)),
          pl.BlockSpec(params["blin_pad"].shape, lambda g: (0, 0)),
      ],
      out_specs=pl.BlockSpec((None, W * Nt, Tp), lambda g: (g, 0, 0)),
      scratch_shapes=[
          pltpu.VMEM((W * Nt, 4 * H2), jnp.float32),   # gin (input gates)
          pltpu.VMEM((W * Nt, H2), jnp.float32),       # h keyed by fwd time
          pltpu.VMEM((W * Nt, H2), jnp.float32),       # h keyed by bwd time
      ],
      compiler_params=pltpu.CompilerParams(
          dimension_semantics=("parallel",)),
  )(
      x_g,
      params["wih_fused"], params["b_fused"], params["whh_fused"],
      params["wlin_fpad"], params["wlin_bpad"], params["blin_pad"],
  )

  # (G, W*Nt, Tp) -> (Np, W, Tp) -> strip batch pad and tag pad.
  out = (out_g.reshape(G, W, Nt, Tp)
              .transpose(0, 2, 1, 3)
              .reshape(Np, W, Tp))
  return out[:N, :, :T]                                         # (N, W, T)


# ----------------------------------------------------------------------------
# Deterministic parameter init (PyTorch-like uniform(-1/sqrt(H), 1/sqrt(H)))
# ----------------------------------------------------------------------------
def init_params(key, word_count, tag_count, Ew, H):
  ks = jax.random.split(key, 11)
  s = 1.0 / jnp.sqrt(jnp.float32(H))

  def u(k, shape):
    return jax.random.uniform(k, shape, jnp.float32, -s, s)

  embed = jax.random.normal(ks[0], (word_count, Ew), jnp.float32)
  wih_f = u(ks[1], (4 * H, Ew)); whh_f = u(ks[2], (4 * H, H))
  bih_f = u(ks[3], (4 * H,));    bhh_f = u(ks[4], (4 * H,))
  wih_b = u(ks[5], (4 * H, Ew)); whh_b = u(ks[6], (4 * H, H))
  bih_b = u(ks[7], (4 * H,));    bhh_b = u(ks[8], (4 * H,))
  wlin = u(ks[9], (tag_count, 2 * H)); blin = u(ks[10], (tag_count,))

  # PyTorch-layout (transposed for right-multiplication) — used by the reference.
  p = {
      "embed": embed,
      "wih_f_t": wih_f.T, "whh_f_t": whh_f.T, "b_f": (bih_f + bhh_f)[None, :],
      "wih_b_t": wih_b.T, "whh_b_t": whh_b.T, "b_b": (bih_b + bhh_b)[None, :],
      "wlin_t": wlin.T, "blin": blin[None, :],
  }

  # Fused / padded layouts consumed by the Pallas kernel.
  T = tag_count
  Tp = _round_up(max(T, 128), 128)            # lane-dense output width
  z_ih = jnp.zeros((Ew, 4 * H), jnp.float32)
  z_hh = jnp.zeros((H, 4 * H), jnp.float32)
  p["wih_fused"] = jnp.concatenate(
      [_fuse_dirs(p["wih_f_t"], z_ih, H), _fuse_dirs(z_ih, p["wih_b_t"], H)],
      axis=0).astype(jnp.bfloat16)                             # (2Ew, 8H) bf16
  p["whh_fused"] = jnp.concatenate(
      [_fuse_dirs(p["whh_f_t"], z_hh, H), _fuse_dirs(z_hh, p["whh_b_t"], H)],
      axis=0).astype(jnp.bfloat16)                             # (2H, 8H) bf16
  p["b_fused"] = _fuse_dirs(p["b_f"], p["b_b"], H)             # (1, 8H) f32
  p["wlin_fpad"] = (jnp.zeros((2 * H, Tp), jnp.float32)
                    .at[:H, :T].set(p["wlin_t"][:H]))          # (2H, Tp)
  p["wlin_bpad"] = (jnp.zeros((2 * H, Tp), jnp.float32)
                    .at[H:, :T].set(p["wlin_t"][H:]))          # (2H, Tp)
  p["blin_pad"] = (jnp.full((1, Tp), -1e30, jnp.float32)
                   .at[:, :T].set(p["blin"]))                  # (1, Tp)
  return p


# ----------------------------------------------------------------------------
# Pure-JAX f32 reference of the same forward pass (for correctness check)
# ----------------------------------------------------------------------------
def pynet_forward_ref(words, params):
  emb = jnp.take(params["embed"], words, axis=0)               # (N, W, Ew)
  N, W, _ = emb.shape
  H = params["whh_f_t"].shape[0]

  def run_dir(wih_t, whh_t, b, reverse):
    xs = jnp.transpose(emb, (1, 0, 2)).astype(jnp.float32)     # (W, N, Ew)
    if reverse:
      xs = xs[::-1]

    def step(carry, x_t):
      h_prev, c_prev = carry
      gates = x_t @ wih_t + h_prev @ whh_t + b
      i = jax.nn.sigmoid(gates[:, 0 * H:1 * H])
      f = jax.nn.sigmoid(gates[:, 1 * H:2 * H])
      g = jnp.tanh(gates[:, 2 * H:3 * H])
      o = jax.nn.sigmoid(gates[:, 3 * H:4 * H])
      c = f * c_prev + i * g
      h = o * jnp.tanh(c)
      return (h, c), h

    h0 = jnp.zeros((N, H), jnp.float32)
    _, hs = lax.scan(step, (h0, h0), xs)
    if reverse:
      hs = hs[::-1]
    return jnp.transpose(hs, (1, 0, 2))                        # (N, W, H)

  hf = run_dir(params["wih_f_t"], params["whh_f_t"], params["b_f"], False)
  hb = run_dir(params["wih_b_t"], params["whh_b_t"], params["b_b"], True)
  hid = jnp.concatenate([hf, hb], axis=-1)                     # (N, W, 2H)
  logits = hid @ params["wlin_t"] + params["blin"]
  return jax.nn.softmax(logits, axis=-1)


if __name__ == "__main__":
  # Small shapes consistent with the module's forward (defaults: Ew=8, H=64).
  N, W = 2, 8            # batch, sequence length
  WORD_COUNT = 20
  TAG_COUNT = 8
  EW = 8                 # word_embed_dims
  H = 64                 # word_rnn_hidden_size (module default; 2H = 128 lanes)

  key = jax.random.PRNGKey(0)
  k_words, k_params = jax.random.split(key)
  words = jax.random.randint(k_words, (N, W), 0, WORD_COUNT, dtype=jnp.int32)
  params = init_params(k_params, WORD_COUNT, TAG_COUNT, EW, H)

  probs = pynet_forward(words, params)
  probs = jax.block_until_ready(probs)

  ref = pynet_forward_ref(words, params)
  assert probs.shape == (N, W, TAG_COUNT)
  # Tolerance accounts for bf16 MXU operands + approx EUP reciprocal
  # (f32 reference; review sanctioned ~1e-2 relaxation for bf16 operands).
  assert jnp.allclose(probs, ref, atol=2e-2, rtol=2e-2), "mismatch vs JAX reference"
  assert jnp.allclose(jnp.sum(probs, axis=-1), 1.0, atol=1e-2), "softmax rows must sum to 1"

  print("KERNEL_OK")
</pallas_src>

<mosaic_0001>
module attributes {stable_mosaic.version = 11 : i64} {
  func.func @_bilstm_tagger_kernel(%arg0: i32, %arg1: memref<1x64x16xbf16, #tpu.memory_space<vmem>>, %arg2: memref<16x512xbf16, #tpu.memory_space<vmem>>, %arg3: memref<1x512xf32, #tpu.memory_space<vmem>>, %arg4: memref<128x512xbf16, #tpu.memory_space<vmem>>, %arg5: memref<128x128xf32, #tpu.memory_space<vmem>>, %arg6: memref<128x128xf32, #tpu.memory_space<vmem>>, %arg7: memref<1x128xf32, #tpu.memory_space<vmem>>, %arg8: memref<1x64x128xf32, #tpu.memory_space<vmem>>, %arg9: memref<64x512xf32, #tpu.memory_space<vmem>>, %arg10: memref<64x128xf32, #tpu.memory_space<vmem>>, %arg11: memref<64x128xf32, #tpu.memory_space<vmem>>) attributes {dimension_semantics = [#tpu.dimension_semantics<parallel>], iteration_bounds = array<i64: 1>, scalar_prefetch = 0 : i64, scratch_operands = 3 : i64, tpu.core_type = #tpu.core_type<tc>, window_params = [{transform_indices = @transform_0, window_bounds = array<i64: 1, 64, 16>}, {pipeline_mode = #tpu.pipeline_mode<synchronous>, transform_indices = @transform_1, window_bounds = array<i64: 16, 512>}, {pipeline_mode = #tpu.pipeline_mode<synchronous>, transform_indices = @transform_2, window_bounds = array<i64: 1, 512>}, {pipeline_mode = #tpu.pipeline_mode<synchronous>, transform_indices = @transform_3, window_bounds = array<i64: 128, 512>}, {pipeline_mode = #tpu.pipeline_mode<synchronous>, transform_indices = @transform_4, window_bounds = array<i64: 128, 128>}, {pipeline_mode = #tpu.pipeline_mode<synchronous>, transform_indices = @transform_5, window_bounds = array<i64: 128, 128>}, {pipeline_mode = #tpu.pipeline_mode<synchronous>, transform_indices = @transform_6, window_bounds = array<i64: 1, 128>}, {transform_indices = @transform_7, window_bounds = array<i64: 1, 64, 128>}]} {
    %c0 = arith.constant 0 : index
    %c0_0 = arith.constant 0 : index
    %0 = vector.load %arg4[%c0, %c0_0] : memref<128x512xbf16, #tpu.memory_space<vmem>>, vector<128x512xbf16>
    %c0_1 = arith.constant 0 : index
    %c0_2 = arith.constant 0 : index
    %c0_3 = arith.constant 0 : index
    %1 = vector.load %arg1[%c0_1, %c0_2, %c0_3] : memref<1x64x16xbf16, #tpu.memory_space<vmem>>, vector<1x64x16xbf16>
    %2 = vector.shape_cast %1 : vector<1x64x16xbf16> to vector<64x16xbf16>
    %c0_4 = arith.constant 0 : index
    %c0_5 = arith.constant 0 : index
    %3 = vector.load %arg2[%c0_4, %c0_5] : memref<16x512xbf16, #tpu.memory_space<vmem>>, vector<16x512xbf16>
    %cst = arith.constant dense<0.000000e+00> : vector<64x512xf32>
    %4 = tpu.matmul %2, %3, %cst {dimension_numbers = #tpu.dot_dimension_numbers<[1], [0], [0], [1], [0, 0, 1, 1], [], []>} : vector<64x16xbf16>, vector<16x512xbf16>, vector<64x512xf32> -> vector<64x512xf32>
    %c0_6 = arith.constant 0 : index
    %c0_7 = arith.constant 0 : index
    %5 = vector.load %arg3[%c0_6, %c0_7] : memref<1x512xf32, #tpu.memory_space<vmem>>, vector<1x512xf32>
    %6 = vector.broadcast %5 : vector<1x512xf32> to vector<64x512xf32>
    %7 = arith.addf %4, %6 : vector<64x512xf32>
    %c0_8 = arith.constant 0 : index
    %c0_9 = arith.constant 0 : index
    %8 = vector.load %arg9[%c0_8, %c0_9] : memref<64x512xf32, #tpu.memory_space<vmem>>, vector<64x512xf32>
    tpu.vector_store %arg9[%c0_8, %c0_9], %7 {strides = array<i32>} : memref<64x512xf32, #tpu.memory_space<vmem>>, vector<64x512xf32>,
    %cst_10 = arith.constant 0.000000e+00 : f32
    %9 = vector.broadcast %cst_10 : f32 to vector<8x128xf32>
    %c0_i32 = arith.constant 0 : i32
    %c8_i32 = arith.constant 8 : i32
    %10 = arith.muli %c0_i32, %c8_i32 : i32
    %11 = tpu.assume_multiple %10, 8 : i32
    %12 = arith.index_cast %11 : i32 to index
    %c0_11 = arith.constant 0 : index
    %13 = vector.load %arg9[%12, %c0_11] : memref<64x512xf32, #tpu.memory_space<vmem>>, vector<8x512xf32>
    %14 = arith.truncf %9 : vector<8x128xf32> to vector<8x128xbf16>
    %cst_12 = arith.constant dense<0.000000e+00> : vector<8x512xf32>
    %15 = tpu.matmul %14, %0, %cst_12 {dimension_numbers = #tpu.dot_dimension_numbers<[1], [0], [0], [1], [0, 0, 1, 1], [], []>} : vector<8x128xbf16>, vector<128x512xbf16>, vector<8x512xf32> -> vector<8x512xf32>
    %16 = arith.addf %13, %15 : vector<8x512xf32>
    %17 = vector.extract_strided_slice %16 {offsets = [0, 0], sizes = [8, 128], strides = [1, 1]} : vector<8x512xf32> to vector<8x128xf32>
    %18 = arith.negf %17 : vector<8x128xf32>
    %19 = math.exp %18 : vector<8x128xf32>
    %cst_13 = arith.constant 1.000000e+00 : f32
    %20 = vector.broadcast %cst_13 : f32 to vector<8x128xf32>
    %21 = arith.addf %20, %19 : vector<8x128xf32>
    %22 = arith.divf %20, %21 : vector<8x128xf32>
    %23 = vector.extract_strided_slice %16 {offsets = [0, 128], sizes = [8, 128], strides = [1, 1]} : vector<8x512xf32> to vector<8x128xf32>
    %24 = arith.negf %23 : vector<8x128xf32>
    %25 = math.exp %24 : vector<8x128xf32>
    %cst_14 = arith.constant 1.000000e+00 : f32
    %26 = vector.broadcast %cst_14 : f32 to vector<8x128xf32>
    %27 = arith.addf %26, %25 : vector<8x128xf32>
    %28 = arith.divf %26, %27 : vector<8x128xf32>
    %29 = vector.extract_strided_slice %16 {offsets = [0, 256], sizes = [8, 128], strides = [1, 1]} : vector<8x512xf32> to vector<8x128xf32>
    %30 = math.tanh %29 : vector<8x128xf32>
    %31 = vector.extract_strided_slice %16 {offsets = [0, 384], sizes = [8, 128], strides = [1, 1]} : vector<8x512xf32> to vector<8x128xf32>
    %32 = arith.negf %31 : vector<8x128xf32>
    %33 = math.exp %32 : vector<8x128xf32>
    %cst_15 = arith.constant 1.000000e+00 : f32
    %34 = vector.broadcast %cst_15 : f32 to vector<8x128xf32>
    %35 = arith.addf %34, %33 : vector<8x128xf32>
    %36 = arith.divf %34, %35 : vector<8x128xf32>
    %37 = arith.mulf %28, %9 : vector<8x128xf32>
    %38 = arith.mulf %22, %30 : vector<8x128xf32>
    %39 = arith.addf %37, %38 : vector<8x128xf32>
    %40 = math.tanh %39 : vector<8x128xf32>
    %41 = arith.mulf %36, %40 : vector<8x128xf32>
    %42 = arith.index_cast %11 : i32 to index
    %c0_16 = arith.constant 0 : index
    %43 = vector.load %arg10[%42, %c0_16] : memref<64x128xf32, #tpu.memory_space<vmem>>, vector<8x128xf32>
    tpu.vector_store %arg10[%42, %c0_16], %41 {strides = array<i32>} : memref<64x128xf32, #tpu.memory_space<vmem>>, vector<8x128xf32>,
    %c7_i32 = arith.constant 7 : i32
    %44 = arith.subi %c7_i32, %c0_i32 : i32
    %c8_i32_17 = arith.constant 8 : i32
    %45 = arith.muli %44, %c8_i32_17 : i32
    %46 = tpu.assume_multiple %45, 8 : i32
    %47 = arith.index_cast %46 : i32 to index
    %c0_18 = arith.constant 0 : index
    %48 = vector.load %arg11[%47, %c0_18] : memref<64x128xf32, #tpu.memory_space<vmem>>, vector<8x128xf32>
    tpu.vector_store %arg11[%47, %c0_18], %41 {strides = array<i32>} : memref<64x128xf32, #tpu.memory_space<vmem>>, vector<8x128xf32>,
    %c1_i32 = arith.constant 1 : i32
    %c8_i32_19 = arith.constant 8 : i32
    %49 = arith.muli %c1_i32, %c8_i32_19 : i32
    %50 = tpu.assume_multiple %49, 8 : i32
    %51 = arith.index_cast %50 : i32 to index
    %c0_20 = arith.constant 0 : index
    %52 = vector.load %arg9[%51, %c0_20] : memref<64x512xf32, #tpu.memory_space<vmem>>, vector<8x512xf32>
    %53 = arith.truncf %41 : vector<8x128xf32> to vector<8x128xbf16>
    %cst_21 = arith.constant dense<0.000000e+00> : vector<8x512xf32>
    %54 = tpu.matmul %53, %0, %cst_21 {dimension_numbers = #tpu.dot_dimension_numbers<[1], [0], [0], [1], [0, 0, 1, 1], [], []>} : vector<8x128xbf16>, vector<128x512xbf16>, vector<8x512xf32> -> vector<8x512xf32>
    %55 = arith.addf %52, %54 : vector<8x512xf32>
    %56 = vector.extract_strided_slice %55 {offsets = [0, 0], sizes = [8, 128], strides = [1, 1]} : vector<8x512xf32> to vector<8x128xf32>
    %57 = arith.negf %56 : vector<8x128xf32>
    %58 = math.exp %57 : vector<8x128xf32>
    %cst_22 = arith.constant 1.000000e+00 : f32
    %59 = vector.broadcast %cst_22 : f32 to vector<8x128xf32>
    %60 = arith.addf %59, %58 : vector<8x128xf32>
    %61 = arith.divf %59, %60 : vector<8x128xf32>
    %62 = vector.extract_strided_slice %55 {offsets = [0, 128], sizes = [8, 128], strides = [1, 1]} : vector<8x512xf32> to vector<8x128xf32>
    %63 = arith.negf %62 : vector<8x128xf32>
    %64 = math.exp %63 : vector<8x128xf32>
    %cst_23 = arith.constant 1.000000e+00 : f32
    %65 = vector.broadcast %cst_23 : f32 to vector<8x128xf32>
    %66 = arith.addf %65, %64 : vector<8x128xf32>
    %67 = arith.divf %65, %66 : vector<8x128xf32>
    %68 = vector.extract_strided_slice %55 {offsets = [0, 256], sizes = [8, 128], strides = [1, 1]} : vector<8x512xf32> to vector<8x128xf32>
    %69 = math.tanh %68 : vector<8x128xf32>
    %70 = vector.extract_strided_slice %55 {offsets = [0, 384], sizes = [8, 128], strides = [1, 1]} : vector<8x512xf32> to vector<8x128xf32>
    %71 = arith.negf %70 : vector<8x128xf32>
    %72 = math.exp %71 : vector<8x128xf32>
    %cst_24 = arith.constant 1.000000e+00 : f32
    %73 = vector.broadcast %cst_24 : f32 to vector<8x128xf32>
    %74 = arith.addf %73, %72 : vector<8x128xf32>
    %75 = arith.divf %73, %74 : vector<8x128xf32>
    %76 = arith.mulf %67, %39 : vector<8x128xf32>
    %77 = arith.mulf %61, %69 : vector<8x128xf32>
    %78 = arith.addf %76, %77 : vector<8x128xf32>
    %79 = math.tanh %78 : vector<8x128xf32>
    %80 = arith.mulf %75, %79 : vector<8x128xf32>
    %81 = arith.index_cast %50 : i32 to index
    %c0_25 = arith.constant 0 : index
    %82 = vector.load %arg10[%81, %c0_25] : memref<64x128xf32, #tpu.memory_space<vmem>>, vector<8x128xf32>
    tpu.vector_store %arg10[%81, %c0_25], %80 {strides = array<i32>} : memref<64x128xf32, #tpu.memory_space<vmem>>, vector<8x128xf32>,
    %c7_i32_26 = arith.constant 7 : i32
    %83 = arith.subi %c7_i32_26, %c1_i32 : i32
    %c8_i32_27 = arith.constant 8 : i32
    %84 = arith.muli %83, %c8_i32_27 : i32
    %85 = tpu.assume_multiple %84, 8 : i32
    %86 = arith.index_cast %85 : i32 to index
    %c0_28 = arith.constant 0 : index
    %87 = vector.load %arg11[%86, %c0_28] : memref<64x128xf32, #tpu.memory_space<vmem>>, vector<8x128xf32>
    tpu.vector_store %arg11[%86, %c0_28], %80 {strides = array<i32>} : memref<64x128xf32, #tpu.memory_space<vmem>>, vector<8x128xf32>,
    %c2_i32 = arith.constant 2 : i32
    %c8_i32_29 = arith.constant 8 : i32
    %88 = arith.muli %c2_i32, %c8_i32_29 : i32
    %89 = tpu.assume_multiple %88, 8 : i32
    %90 = arith.index_cast %89 : i32 to index
    %c0_30 = arith.constant 0 : index
    %91 = vector.load %arg9[%90, %c0_30] : memref<64x512xf32, #tpu.memory_space<vmem>>, vector<8x512xf32>
    %92 = arith.truncf %80 : vector<8x128xf32> to vector<8x128xbf16>
    %cst_31 = arith.constant dense<0.000000e+00> : vector<8x512xf32>
    %93 = tpu.matmul %92, %0, %cst_31 {dimension_numbers = #tpu.dot_dimension_numbers<[1], [0], [0], [1], [0, 0, 1, 1], [], []>} : vector<8x128xbf16>, vector<128x512xbf16>, vector<8x512xf32> -> vector<8x512xf32>
    %94 = arith.addf %91, %93 : vector<8x512xf32>
    %95 = vector.extract_strided_slice %94 {offsets = [0, 0], sizes = [8, 128], strides = [1, 1]} : vector<8x512xf32> to vector<8x128xf32>
    %96 = arith.negf %95 : vector<8x128xf32>
    %97 = math.exp %96 : vector<8x128xf32>
    %cst_32 = arith.constant 1.000000e+00 : f32
    %98 = vector.broadcast %cst_32 : f32 to vector<8x128xf32>
    %99 = arith.addf %98, %97 : vector<8x128xf32>
    %100 = arith.divf %98, %99 : vector<8x128xf32>
    %101 = vector.extract_strided_slice %94 {offsets = [0, 128], sizes = [8, 128], strides = [1, 1]} : vector<8x512xf32> to vector<8x128xf32>
    %102 = arith.negf %101 : vector<8x128xf32>
    %103 = math.exp %102 : vector<8x128xf32>
    %cst_33 = arith.constant 1.000000e+00 : f32
    %104 = vector.broadcast %cst_33 : f32 to vector<8x128xf32>
    %105 = arith.addf %104, %103 : vector<8x128xf32>
    %106 = arith.divf %104, %105 : vector<8x128xf32>
    %107 = vector.extract_strided_slice %94 {offsets = [0, 256], sizes = [8, 128], strides = [1, 1]} : vector<8x512xf32> to vector<8x128xf32>
    %108 = math.tanh %107 : vector<8x128xf32>
    %109 = vector.extract_strided_slice %94 {offsets = [0, 384], sizes = [8, 128], strides = [1, 1]} : vector<8x512xf32> to vector<8x128xf32>
    %110 = arith.negf %109 : vector<8x128xf32>
    %111 = math.exp %110 : vector<8x128xf32>
    %cst_34 = arith.constant 1.000000e+00 : f32
    %112 = vector.broadcast %cst_34 : f32 to vector<8x128xf32>
    %113 = arith.addf %112, %111 : vector<8x128xf32>
    %114 = arith.divf %112, %113 : vector<8x128xf32>
    %115 = arith.mulf %106, %78 : vector<8x128xf32>
    %116 = arith.mulf %100, %108 : vector<8x128xf32>
    %117 = arith.addf %115, %116 : vector<8x128xf32>
    %118 = math.tanh %117 : vector<8x128xf32>
    %119 = arith.mulf %114, %118 : vector<8x128xf32>
    %120 = arith.index_cast %89 : i32 to index
    %c0_35 = arith.constant 0 : index
    %121 = vector.load %arg10[%120, %c0_35] : memref<64x128xf32, #tpu.memory_space<vmem>>, vector<8x128xf32>
    tpu.vector_store %arg10[%120, %c0_35], %119 {strides = array<i32>} : memref<64x128xf32, #tpu.memory_space<vmem>>, vector<8x128xf32>,
    %c7_i32_36 = arith.constant 7 : i32
    %122 = arith.subi %c7_i32_36, %c2_i32 : i32
    %c8_i32_37 = arith.constant 8 : i32
    %123 = arith.muli %122, %c8_i32_37 : i32
    %124 = tpu.assume_multiple %123, 8 : i32
    %125 = arith.index_cast %124 : i32 to index
    %c0_38 = arith.constant 0 : index
    %126 = vector.load %arg11[%125, %c0_38] : memref<64x128xf32, #tpu.memory_space<vmem>>, vector<8x128xf32>
    tpu.vector_store %arg11[%125, %c0_38], %119 {strides = array<i32>} : memref<64x128xf32, #tpu.memory_space<vmem>>, vector<8x128xf32>,
    %c3_i32 = arith.constant 3 : i32
    %c8_i32_39 = arith.constant 8 : i32
    %127 = arith.muli %c3_i32, %c8_i32_39 : i32
    %128 = tpu.assume_multiple %127, 8 : i32
    %129 = arith.index_cast %128 : i32 to index
    %c0_40 = arith.constant 0 : index
    %130 = vector.load %arg9[%129, %c0_40] : memref<64x512xf32, #tpu.memory_space<vmem>>, vector<8x512xf32>
    %131 = arith.truncf %119 : vector<8x128xf32> to vector<8x128xbf16>
    %cst_41 = arith.constant dense<0.000000e+00> : vector<8x512xf32>
    %132 = tpu.matmul %131, %0, %cst_41 {dimension_numbers = #tpu.dot_dimension_numbers<[1], [0], [0], [1], [0, 0, 1, 1], [], []>} : vector<8x128xbf16>, vector<128x512xbf16>, vector<8x512xf32> -> vector<8x512xf32>
    %133 = arith.addf %130, %132 : vector<8x512xf32>
    %134 = vector.extract_strided_slice %133 {offsets = [0, 0], sizes = [8, 128], strides = [1, 1]} : vector<8x512xf32> to vector<8x128xf32>
    %135 = arith.negf %134 : vector<8x128xf32>
    %136 = math.exp %135 : vector<8x128xf32>
    %cst_42 = arith.constant 1.000000e+00 : f32
    %137 = vector.broadcast %cst_42 : f32 to vector<8x128xf32>
    %138 = arith.addf %137, %136 : vector<8x128xf32>
    %139 = arith.divf %137, %138 : vector<8x128xf32>
    %140 = vector.extract_strided_slice %133 {offsets = [0, 128], sizes = [8, 128], strides = [1, 1]} : vector<8x512xf32> to vector<8x128xf32>
    %141 = arith.negf %140 : vector<8x128xf32>
    %142 = math.exp %141 : vector<8x128xf32>
    %cst_43 = arith.constant 1.000000e+00 : f32
    %143 = vector.broadcast %cst_43 : f32 to vector<8x128xf32>
    %144 = arith.addf %143, %142 : vector<8x128xf32>
    %145 = arith.divf %143, %144 : vector<8x128xf32>
    %146 = vector.extract_strided_slice %133 {offsets = [0, 256], sizes = [8, 128], strides = [1, 1]} : vector<8x512xf32> to vector<8x128xf32>
    %147 = math.tanh %146 : vector<8x128xf32>
    %148 = vector.extract_strided_slice %133 {offsets = [0, 384], sizes = [8, 128], strides = [1, 1]} : vector<8x512xf32> to vector<8x128xf32>
    %149 = arith.negf %148 : vector<8x128xf32>
    %150 = math.exp %149 : vector<8x128xf32>
    %cst_44 = arith.constant 1.000000e+00 : f32
    %151 = vector.broadcast %cst_44 : f32 to vector<8x128xf32>
    %152 = arith.addf %151, %150 : vector<8x128xf32>
    %153 = arith.divf %151, %152 : vector<8x128xf32>
    %154 = arith.mulf %145, %117 : vector<8x128xf32>
    %155 = arith.mulf %139, %147 : vector<8x128xf32>
    %156 = arith.addf %154, %155 : vector<8x128xf32>
    %157 = math.tanh %156 : vector<8x128xf32>
    %158 = arith.mulf %153, %157 : vector<8x128xf32>
    %159 = arith.index_cast %128 : i32 to index
    %c0_45 = arith.constant 0 : index
    %160 = vector.load %arg10[%159, %c0_45] : memref<64x128xf32, #tpu.memory_space<vmem>>, vector<8x128xf32>
    tpu.vector_store %arg10[%159, %c0_45], %158 {strides = array<i32>} : memref<64x128xf32, #tpu.memory_space<vmem>>, vector<8x128xf32>,
    %c7_i32_46 = arith.constant 7 : i32
    %161 = arith.subi %c7_i32_46, %c3_i32 : i32
    %c8_i32_47 = arith.constant 8 : i32
    %162 = arith.muli %161, %c8_i32_47 : i32
    %163 = tpu.assume_multiple %162, 8 : i32
    %164 = arith.index_cast %163 : i32 to index
    %c0_48 = arith.constant 0 : index
    %165 = vector.load %arg11[%164, %c0_48] : memref<64x128xf32, #tpu.memory_space<vmem>>, vector<8x128xf32>
    tpu.vector_store %arg11[%164, %c0_48], %158 {strides = array<i32>} : memref<64x128xf32, #tpu.memory_space<vmem>>, vector<8x128xf32>,
    %c4_i32 = arith.constant 4 : i32
    %c8_i32_49 = arith.constant 8 : i32
    %166 = arith.muli %c4_i32, %c8_i32_49 : i32
    %167 = tpu.assume_multiple %166, 8 : i32
    %168 = arith.index_cast %167 : i32 to index
    %c0_50 = arith.constant 0 : index
    %169 = vector.load %arg9[%168, %c0_50] : memref<64x512xf32, #tpu.memory_space<vmem>>, vector<8x512xf32>
    %170 = arith.truncf %158 : vector<8x128xf32> to vector<8x128xbf16>
    %cst_51 = arith.constant dense<0.000000e+00> : vector<8x512xf32>
    %171 = tpu.matmul %170, %0, %cst_51 {dimension_numbers = #tpu.dot_dimension_numbers<[1], [0], [0], [1], [0, 0, 1, 1], [], []>} : vector<8x128xbf16>, vector<128x512xbf16>, vector<8x512xf32> -> vector<8x512xf32>
    %172 = arith.addf %169, %171 : vector<8x512xf32>
    %173 = vector.extract_strided_slice %172 {offsets = [0, 0], sizes = [8, 128], strides = [1, 1]} : vector<8x512xf32> to vector<8x128xf32>
    %174 = arith.negf %173 : vector<8x128xf32>
    %175 = math.exp %174 : vector<8x128xf32>
    %cst_52 = arith.constant 1.000000e+00 : f32
    %176 = vector.broadcast %cst_52 : f32 to vector<8x128xf32>
    %177 = arith.addf %176, %175 : vector<8x128xf32>
    %178 = arith.divf %176, %177 : vector<8x128xf32>
    %179 = vector.extract_strided_slice %172 {offsets = [0, 128], sizes = [8, 128], strides = [1, 1]} : vector<8x512xf32> to vector<8x128xf32>
    %180 = arith.negf %179 : vector<8x128xf32>
    %181 = math.exp %180 : vector<8x128xf32>
    %cst_53 = arith.constant 1.000000e+00 : f32
    %182 = vector.broadcast %cst_53 : f32 to vector<8x128xf32>
    %183 = arith.addf %182, %181 : vector<8x128xf32>
    %184 = arith.divf %182, %183 : vector<8x128xf32>
    %185 = vector.extract_strided_slice %172 {offsets = [0, 256], sizes = [8, 128], strides = [1, 1]} : vector<8x512xf32> to vector<8x128xf32>
    %186 = math.tanh %185 : vector<8x128xf32>
    %187 = vector.extract_strided_slice %172 {offsets = [0, 384], sizes = [8, 128], strides = [1, 1]} : vector<8x512xf32> to vector<8x128xf32>
    %188 = arith.negf %187 : vector<8x128xf32>
    %189 = math.exp %188 : vector<8x128xf32>
    %cst_54 = arith.constant 1.000000e+00 : f32
    %190 = vector.broadcast %cst_54 : f32 to vector<8x128xf32>
    %191 = arith.addf %190, %189 : vector<8x128xf32>
    %192 = arith.divf %190, %191 : vector<8x128xf32>
    %193 = arith.mulf %184, %156 : vector<8x128xf32>
    %194 = arith.mulf %178, %186 : vector<8x128xf32>
    %195 = arith.addf %193, %194 : vector<8x128xf32>
    %196 = math.tanh %195 : vector<8x128xf32>
    %197 = arith.mulf %192, %196 : vector<8x128xf32>
    %198 = arith.index_cast %167 : i32 to index
    %c0_55 = arith.constant 0 : index
    %199 = vector.load %arg10[%198, %c0_55] : memref<64x128xf32, #tpu.memory_space<vmem>>, vector<8x128xf32>
    tpu.vector_store %arg10[%198, %c0_55], %197 {strides = array<i32>} : memref<64x128xf32, #tpu.memory_space<vmem>>, vector<8x128xf32>,
    %c7_i32_56 = arith.constant 7 : i32
    %200 = arith.subi %c7_i32_56, %c4_i32 : i32
    %c8_i32_57 = arith.constant 8 : i32
    %201 = arith.muli %200, %c8_i32_57 : i32
    %202 = tpu.assume_multiple %201, 8 : i32
    %203 = arith.index_cast %202 : i32 to index
    %c0_58 = arith.constant 0 : index
    %204 = vector.load %arg11[%203, %c0_58] : memref<64x128xf32, #tpu.memory_space<vmem>>, vector<8x128xf32>
    tpu.vector_store %arg11[%203, %c0_58], %197 {strides = array<i32>} : memref<64x128xf32, #tpu.memory_space<vmem>>, vector<8x128xf32>,
    %c5_i32 = arith.constant 5 : i32
    %c8_i32_59 = arith.constant 8 : i32
    %205 = arith.muli %c5_i32, %c8_i32_59 : i32
    %206 = tpu.assume_multiple %205, 8 : i32
    %207 = arith.index_cast %206 : i32 to index
    %c0_60 = arith.constant 0 : index
    %208 = vector.load %arg9[%207, %c0_60] : memref<64x512xf32, #tpu.memory_space<vmem>>, vector<8x512xf32>
    %209 = arith.truncf %197 : vector<8x128xf32> to vector<8x128xbf16>
    %cst_61 = arith.constant dense<0.000000e+00> : vector<8x512xf32>
    %210 = tpu.matmul %209, %0, %cst_61 {dimension_numbers = #tpu.dot_dimension_numbers<[1], [0], [0], [1], [0, 0, 1, 1], [], []>} : vector<8x128xbf16>, vector<128x512xbf16>, vector<8x512xf32> -> vector<8x512xf32>
    %211 = arith.addf %208, %210 : vector<8x512xf32>
    %212 = vector.extract_strided_slice %211 {offsets = [0, 0], sizes = [8, 128], strides = [1, 1]} : vector<8x512xf32> to vector<8x128xf32>
    %213 = arith.negf %212 : vector<8x128xf32>
    %214 = math.exp %213 : vector<8x128xf32>
    %cst_62 = arith.constant 1.000000e+00 : f32
    %215 = vector.broadcast %cst_62 : f32 to vector<8x128xf32>
    %216 = arith.addf %215, %214 : vector<8x128xf32>
    %217 = arith.divf %215, %216 : vector<8x128xf32>
    %218 = vector.extract_strided_slice %211 {offsets = [0, 128], sizes = [8, 128], strides = [1, 1]} : vector<8x512xf32> to vector<8x128xf32>
    %219 = arith.negf %218 : vector<8x128xf32>
    %220 = math.exp %219 : vector<8x128xf32>
    %cst_63 = arith.constant 1.000000e+00 : f32
    %221 = vector.broadcast %cst_63 : f32 to vector<8x128xf32>
    %222 = arith.addf %221, %220 : vector<8x128xf32>
    %223 = arith.divf %221, %222 : vector<8x128xf32>
    %224 = vector.extract_strided_slice %211 {offsets = [0, 256], sizes = [8, 128], strides = [1, 1]} : vector<8x512xf32> to vector<8x128xf32>
    %225 = math.tanh %224 : vector<8x128xf32>
    %226 = vector.extract_strided_slice %211 {offsets = [0, 384], sizes = [8, 128], strides = [1, 1]} : vector<8x512xf32> to vector<8x128xf32>
    %227 = arith.negf %226 : vector<8x128xf32>
    %228 = math.exp %227 : vector<8x128xf32>
    %cst_64 = arith.constant 1.000000e+00 : f32
    %229 = vector.broadcast %cst_64 : f32 to vector<8x128xf32>
    %230 = arith.addf %229, %228 : vector<8x128xf32>
    %231 = arith.divf %229, %230 : vector<8x128xf32>
    %232 = arith.mulf %223, %195 : vector<8x128xf32>
    %233 = arith.mulf %217, %225 : vector<8x128xf32>
    %234 = arith.addf %232, %233 : vector<8x128xf32>
    %235 = math.tanh %234 : vector<8x128xf32>
    %236 = arith.mulf %231, %235 : vector<8x128xf32>
    %237 = arith.index_cast %206 : i32 to index
    %c0_65 = arith.constant 0 : index
    %238 = vector.load %arg10[%237, %c0_65] : memref<64x128xf32, #tpu.memory_space<vmem>>, vector<8x128xf32>
    tpu.vector_store %arg10[%237, %c0_65], %236 {strides = array<i32>} : memref<64x128xf32, #tpu.memory_space<vmem>>, vector<8x128xf32>,
    %c7_i32_66 = arith.constant 7 : i32
    %239 = arith.subi %c7_i32_66, %c5_i32 : i32
    %c8_i32_67 = arith.constant 8 : i32
    %240 = arith.muli %239, %c8_i32_67 : i32
    %241 = tpu.assume_multiple %240, 8 : i32
    %242 = arith.index_cast %241 : i32 to index
    %c0_68 = arith.constant 0 : index
    %243 = vector.load %arg11[%242, %c0_68] : memref<64x128xf32, #tpu.memory_space<vmem>>, vector<8x128xf32>
    tpu.vector_store %arg11[%242, %c0_68], %236 {strides = array<i32>} : memref<64x128xf32, #tpu.memory_space<vmem>>, vector<8x128xf32>,
    %c6_i32 = arith.constant 6 : i32
    %c8_i32_69 = arith.constant 8 : i32
    %244 = arith.muli %c6_i32, %c8_i32_69 : i32
    %245 = tpu.assume_multiple %244, 8 : i32
    %246 = arith.index_cast %245 : i32 to index
    %c0_70 = arith.constant 0 : index
    %247 = vector.load %arg9[%246, %c0_70] : memref<64x512xf32, #tpu.memory_space<vmem>>, vector<8x512xf32>
    %248 = arith.truncf %236 : vector<8x128xf32> to vector<8x128xbf16>
    %cst_71 = arith.constant dense<0.000000e+00> : vector<8x512xf32>
    %249 = tpu.matmul %248, %0, %cst_71 {dimension_numbers = #tpu.dot_dimension_numbers<[1], [0], [0], [1], [0, 0, 1, 1], [], []>} : vector<8x128xbf16>, vector<128x512xbf16>, vector<8x512xf32> -> vector<8x512xf32>
    %250 = arith.addf %247, %249 : vector<8x512xf32>
    %251 = vector.extract_strided_slice %250 {offsets = [0, 0], sizes = [8, 128], strides = [1, 1]} : vector<8x512xf32> to vector<8x128xf32>
    %252 = arith.negf %251 : vector<8x128xf32>
    %253 = math.exp %252 : vector<8x128xf32>
    %cst_72 = arith.constant 1.000000e+00 : f32
    %254 = vector.broadcast %cst_72 : f32 to vector<8x128xf32>
    %255 = arith.addf %254, %253 : vector<8x128xf32>
    %256 = arith.divf %254, %255 : vector<8x128xf32>
    %257 = vector.extract_strided_slice %250 {offsets = [0, 128], sizes = [8, 128], strides = [1, 1]} : vector<8x512xf32> to vector<8x128xf32>
    %258 = arith.negf %257 : vector<8x128xf32>
    %259 = math.exp %258 : vector<8x128xf32>
    %cst_73 = arith.constant 1.000000e+00 : f32
    %260 = vector.broadcast %cst_73 : f32 to vector<8x128xf32>
    %261 = arith.addf %260, %259 : vector<8x128xf32>
    %262 = arith.divf %260, %261 : vector<8x128xf32>
    %263 = vector.extract_strided_slice %250 {offsets = [0, 256], sizes = [8, 128], strides = [1, 1]} : vector<8x512xf32> to vector<8x128xf32>
    %264 = math.tanh %263 : vector<8x128xf32>
    %265 = vector.extract_strided_slice %250 {offsets = [0, 384], sizes = [8, 128], strides = [1, 1]} : vector<8x512xf32> to vector<8x128xf32>
    %266 = arith.negf %265 : vector<8x128xf32>
    %267 = math.exp %266 : vector<8x128xf32>
    %cst_74 = arith.constant 1.000000e+00 : f32
    %268 = vector.broadcast %cst_74 : f32 to vector<8x128xf32>
    %269 = arith.addf %268, %267 : vector<8x128xf32>
    %270 = arith.divf %268, %269 : vector<8x128xf32>
    %271 = arith.mulf %262, %234 : vector<8x128xf32>
    %272 = arith.mulf %256, %264 : vector<8x128xf32>
    %273 = arith.addf %271, %272 : vector<8x128xf32>
    %274 = math.tanh %273 : vector<8x128xf32>
    %275 = arith.mulf %270, %274 : vector<8x128xf32>
    %276 = arith.index_cast %245 : i32 to index
    %c0_75 = arith.constant 0 : index
    %277 = vector.load %arg10[%276, %c0_75] : memref<64x128xf32, #tpu.memory_space<vmem>>, vector<8x128xf32>
    tpu.vector_store %arg10[%276, %c0_75], %275 {strides = array<i32>} : memref<64x128xf32, #tpu.memory_space<vmem>>, vector<8x128xf32>,
    %c7_i32_76 = arith.constant 7 : i32
    %278 = arith.subi %c7_i32_76, %c6_i32 : i32
    %c8_i32_77 = arith.constant 8 : i32
    %279 = arith.muli %278, %c8_i32_77 : i32
    %280 = tpu.assume_multiple %279, 8 : i32
    %281 = arith.index_cast %280 : i32 to index
    %c0_78 = arith.constant 0 : index
    %282 = vector.load %arg11[%281, %c0_78] : memref<64x128xf32, #tpu.memory_space<vmem>>, vector<8x128xf32>
    tpu.vector_store %arg11[%281, %c0_78], %275 {strides = array<i32>} : memref<64x128xf32, #tpu.memory_space<vmem>>, vector<8x128xf32>,
    %c7_i32_79 = arith.constant 7 : i32
    %c8_i32_80 = arith.constant 8 : i32
    %283 = arith.muli %c7_i32_79, %c8_i32_80 : i32
    %284 = tpu.assume_multiple %283, 8 : i32
    %285 = arith.index_cast %284 : i32 to index
    %c0_81 = arith.constant 0 : index
    %286 = vector.load %arg9[%285, %c0_81] : memref<64x512xf32, #tpu.memory_space<vmem>>, vector<8x512xf32>
    %287 = arith.truncf %275 : vector<8x128xf32> to vector<8x128xbf16>
    %cst_82 = arith.constant dense<0.000000e+00> : vector<8x512xf32>
    %288 = tpu.matmul %287, %0, %cst_82 {dimension_numbers = #tpu.dot_dimension_numbers<[1], [0], [0], [1], [0, 0, 1, 1], [], []>} : vector<8x128xbf16>, vector<128x512xbf16>, vector<8x512xf32> -> vector<8x512xf32>
    %289 = arith.addf %286, %288 : vector<8x512xf32>
    %290 = vector.extract_strided_slice %289 {offsets = [0, 0], sizes = [8, 128], strides = [1, 1]} : vector<8x512xf32> to vector<8x128xf32>
    %291 = arith.negf %290 : vector<8x128xf32>
    %292 = math.exp %291 : vector<8x128xf32>
    %cst_83 = arith.constant 1.000000e+00 : f32
    %293 = vector.broadcast %cst_83 : f32 to vector<8x128xf32>
    %294 = arith.addf %293, %292 : vector<8x128xf32>
    %295 = arith.divf %293, %294 : vector<8x128xf32>
    %296 = vector.extract_strided_slice %289 {offsets = [0, 128], sizes = [8, 128], strides = [1, 1]} : vector<8x512xf32> to vector<8x128xf32>
    %297 = arith.negf %296 : vector<8x128xf32>
    %298 = math.exp %297 : vector<8x128xf32>
    %cst_84 = arith.constant 1.000000e+00 : f32
    %299 = vector.broadcast %cst_84 : f32 to vector<8x128xf32>
    %300 = arith.addf %299, %298 : vector<8x128xf32>
    %301 = arith.divf %299, %300 : vector<8x128xf32>
    %302 = vector.extract_strided_slice %289 {offsets = [0, 256], sizes = [8, 128], strides = [1, 1]} : vector<8x512xf32> to vector<8x128xf32>
    %303 = math.tanh %302 : vector<8x128xf32>
    %304 = vector.extract_strided_slice %289 {offsets = [0, 384], sizes = [8, 128], strides = [1, 1]} : vector<8x512xf32> to vector<8x128xf32>
    %305 = arith.negf %304 : vector<8x128xf32>
    %306 = math.exp %305 : vector<8x128xf32>
    %cst_85 = arith.constant 1.000000e+00 : f32
    %307 = vector.broadcast %cst_85 : f32 to vector<8x128xf32>
    %308 = arith.addf %307, %306 : vector<8x128xf32>
    %309 = arith.divf %307, %308 : vector<8x128xf32>
    %310 = arith.mulf %301, %273 : vector<8x128xf32>
    %311 = arith.mulf %295, %303 : vector<8x128xf32>
    %312 = arith.addf %310, %311 : vector<8x128xf32>
    %313 = math.tanh %312 : vector<8x128xf32>
    %314 = arith.mulf %309, %313 : vector<8x128xf32>
    %315 = arith.index_cast %284 : i32 to index
    %c0_86 = arith.constant 0 : index
    %316 = vector.load %arg10[%315, %c0_86] : memref<64x128xf32, #tpu.memory_space<vmem>>, vector<8x128xf32>
    tpu.vector_store %arg10[%315, %c0_86], %314 {strides = array<i32>} : memref<64x128xf32, #tpu.memory_space<vmem>>, vector<8x128xf32>,
    %c7_i32_87 = arith.constant 7 : i32
    %317 = arith.subi %c7_i32_87, %c7_i32_79 : i32
    %c8_i32_88 = arith.constant 8 : i32
    %318 = arith.muli %317, %c8_i32_88 : i32
    %319 = tpu.assume_multiple %318, 8 : i32
    %320 = arith.index_cast %319 : i32 to index
    %c0_89 = arith.constant 0 : index
    %321 = vector.load %arg11[%320, %c0_89] : memref<64x128xf32, #tpu.memory_space<vmem>>, vector<8x128xf32>
    tpu.vector_store %arg11[%320, %c0_89], %314 {strides = array<i32>} : memref<64x128xf32, #tpu.memory_space<vmem>>, vector<8x128xf32>,
    %c8_i32_90 = arith.constant 8 : i32
    %c0_91 = arith.constant 0 : index
    %c0_92 = arith.constant 0 : index
    %322 = vector.load %arg10[%c0_91, %c0_92] : memref<64x128xf32, #tpu.memory_space<vmem>>, vector<64x128xf32>
    %c0_93 = arith.constant 0 : index
    %c0_94 = arith.constant 0 : index
    %323 = vector.load %arg5[%c0_93, %c0_94] : memref<128x128xf32, #tpu.memory_space<vmem>>, vector<128x128xf32>
    %cst_95 = arith.constant dense<0.000000e+00> : vector<64x128xf32>
    %324 = tpu.matmul %322, %323, %cst_95 {dimension_numbers = #tpu.dot_dimension_numbers<[1], [0], [0], [1], [0, 0, 1, 1], [], []>} : vector<64x128xf32>, vector<128x128xf32>, vector<64x128xf32> -> vector<64x128xf32>
    %c0_96 = arith.constant 0 : index
    %c0_97 = arith.constant 0 : index
    %325 = vector.load %arg11[%c0_96, %c0_97] : memref<64x128xf32, #tpu.memory_space<vmem>>, vector<64x128xf32>
    %c0_98 = arith.constant 0 : index
    %c0_99 = arith.constant 0 : index
    %326 = vector.load %arg6[%c0_98, %c0_99] : memref<128x128xf32, #tpu.memory_space<vmem>>, vector<128x128xf32>
    %cst_100 = arith.constant dense<0.000000e+00> : vector<64x128xf32>
    %327 = tpu.matmul %325, %326, %cst_100 {dimension_numbers = #tpu.dot_dimension_numbers<[1], [0], [0], [1], [0, 0, 1, 1], [], []>} : vector<64x128xf32>, vector<128x128xf32>, vector<64x128xf32> -> vector<64x128xf32>
    %328 = arith.addf %324, %327 : vector<64x128xf32>
    %c0_101 = arith.constant 0 : index
    %c0_102 = arith.constant 0 : index
    %329 = vector.load %arg7[%c0_101, %c0_102] : memref<1x128xf32, #tpu.memory_space<vmem>>, vector<1x128xf32>
    %330 = vector.broadcast %329 : vector<1x128xf32> to vector<64x128xf32>
    %331 = arith.addf %328, %330 : vector<64x128xf32>
    %cst_103 = arith.constant dense<0xFF800000> : vector<64xf32>
    %332 = vector.multi_reduction <maximumf>, %331, %cst_103 [1] : vector<64x128xf32> to vector<64xf32>
    %333 = vector.shape_cast %332 : vector<64xf32> to vector<64x1xf32>
    %334 = vector.broadcast %333 : vector<64x1xf32> to vector<64x128xf32>
    %335 = arith.subf %331, %334 : vector<64x128xf32>
    %336 = math.exp %335 : vector<64x128xf32>
    %cst_104 = arith.constant dense<0.000000e+00> : vector<64xf32>
    %337 = vector.multi_reduction <add>, %336, %cst_104 [1] : vector<64x128xf32> to vector<64xf32>
    %338 = vector.shape_cast %337 : vector<64xf32> to vector<64x1xf32>
    %339 = tpu.reciprocal %338 {approx = true} : vector<64x1xf32> -> vector<64x1xf32>
    %340 = vector.broadcast %339 : vector<64x1xf32> to vector<64x128xf32>
    %341 = arith.mulf %336, %340 : vector<64x128xf32>
    %c0_105 = arith.constant 0 : index
    %c0_106 = arith.constant 0 : index
    %c0_107 = arith.constant 0 : index
    %342 = vector.load %arg8[%c0_105, %c0_106, %c0_107] : memref<1x64x128xf32, #tpu.memory_space<vmem>>, vector<1x64x128xf32>
    %343 = vector.shape_cast %342 : vector<1x64x128xf32> to vector<64x128xf32>
    %344 = vector.shape_cast %341 : vector<64x128xf32> to vector<1x64x128xf32>
    tpu.vector_store %arg8[%c0_105, %c0_106, %c0_107], %344 {strides = array<i32>} : memref<1x64x128xf32, #tpu.memory_space<vmem>>, vector<1x64x128xf32>,
    return
  }
  func.func @transform_0(%arg0: i32) -> (i32, i32, i32) {
    %c0_i32 = arith.constant 0 : i32
    %c0_i32_0 = arith.constant 0 : i32
    %c0_i32_1 = arith.constant 0 : i32
    return %arg0, %c0_i32, %c0_i32_0 : i32, i32, i32
  }
  func.func @transform_1(%arg0: i32) -> (i32, i32) {
    %c0_i32 = arith.constant 0 : i32
    %c0_i32_0 = arith.constant 0 : i32
    %c0_i32_1 = arith.constant 0 : i32
    return %c0_i32, %c0_i32_0 : i32, i32
  }
  func.func @transform_2(%arg0: i32) -> (i32, i32) {
    %c0_i32 = arith.constant 0 : i32
    %c0_i32_0 = arith.constant 0 : i32
    %c0_i32_1 = arith.constant 0 : i32
    return %c0_i32, %c0_i32_0 : i32, i32
  }
  func.func @transform_3(%arg0: i32) -> (i32, i32) {
    %c0_i32 = arith.constant 0 : i32
    %c0_i32_0 = arith.constant 0 : i32
    %c0_i32_1 = arith.constant 0 : i32
    return %c0_i32, %c0_i32_0 : i32, i32
  }
  func.func @transform_4(%arg0: i32) -> (i32, i32) {
    %c0_i32 = arith.constant 0 : i32
    %c0_i32_0 = arith.constant 0 : i32
    %c0_i32_1 = arith.constant 0 : i32
    return %c0_i32, %c0_i32_0 : i32, i32
  }
  func.func @transform_5(%arg0: i32) -> (i32, i32) {
    %c0_i32 = arith.constant 0 : i32
    %c0_i32_0 = arith.constant 0 : i32
    %c0_i32_1 = arith.constant 0 : i32
    return %c0_i32, %c0_i32_0 : i32, i32
  }
  func.func @transform_6(%arg0: i32) -> (i32, i32) {
    %c0_i32 = arith.constant 0 : i32
    %c0_i32_0 = arith.constant 0 : i32
    %c0_i32_1 = arith.constant 0 : i32
    return %c0_i32, %c0_i32_0 : i32, i32
  }
  func.func @transform_7(%arg0: i32) -> (i32, i32, i32) {
    %c0_i32 = arith.constant 0 : i32
    %c0_i32_0 = arith.constant 0 : i32
    %c0_i32_1 = arith.constant 0 : i32
    return %arg0, %c0_i32, %c0_i32_0 : i32, i32, i32
  }
}

</mosaic_0001>

<llo_original>
// kernel: pynet_forward.1
$region0: #{pynet_forward.1}
  #allocation0 [shape = 'u32[]', space=smem, size = 0x4, offset = 0x4, fixed_abs, tag = 'smem constant byte address 0x4 - core index']
  #allocation1 [shape = 'u32[144,128]{1,0:T(1,128)}', space=vmem, size = 0x12000, scoped, tag = 'internal scratch']
  #allocation2 [shape = 'f32[64,512]{1,0:T(8,128)}', space=vmem, size = 0x20000, scoped, tag = 'scratch operand']
  #allocation3 [shape = 'f32[64,128]{1,0:T(8,128)}', space=vmem, size = 0x8000, scoped, tag = 'scratch operand']
  #allocation4 [shape = 'f32[64,128]{1,0:T(8,128)}', space=vmem, size = 0x8000, scoped, tag = 'scratch operand']
  %s0 = inlined_call_operand.vmem [shape: bf16[1,64,16], index: 0, kind: input, shape index: {}]
  %s1 = inlined_call_operand.hbm [shape: bf16[16,512], index: 1, kind: input, shape index: {}]
  %s2 = inlined_call_operand.vmem [shape: f32[1,512], index: 2, kind: input, shape index: {}]
  %s3 = inlined_call_operand.vmem [shape: bf16[128,512], index: 3, kind: input, shape index: {}]
  %s4 = inlined_call_operand.vmem [shape: f32[128,128], index: 4, kind: input, shape index: {}]
  %s5 = inlined_call_operand.hbm [shape: f32[128,128], index: 5, kind: input, shape index: {}]
  %s6 = inlined_call_operand.vmem [shape: f32[1,128], index: 6, kind: input, shape index: {}]
  %s7 = inlined_call_operand.vmem [shape: f32[1,64,128], index: 7, kind: output, shape index: {}]
  %s8 = sld [smem:[#allocation0]]
  $region46: #{pynet_forward.1} parent=0
    _
  %s10 = ssub.s32 1, %s8
  %s11 = scalar_select 0, %s10, %s8
  $region1: #{pynet_forward.1} parent=0
    #allocation5 [shape = 'u8[16384]{0}', space=vmem, size = 0x4000, scoped, tag = 'input window, operand 1, single buffered']
    #allocation6 [shape = 's32[1]{0}', space=sflag, size = 0x4, scoped, tag = 'scoped memory for pynet_forward.1']
    #allocation7 [shape = 'u8[65536]{0}', space=vmem, size = 0x10000, scoped, tag = 'input window, operand 5, single buffered']
    #allocation8 [shape = 's32[1]{0}', space=sflag, size = 0x4, scoped, tag = 'scoped memory for pynet_forward.1']
    %12 = vsyncpa [#allocation6], 0
    %13 = vsyncpa [#allocation8], 0
    // Predicated region
    $region2: #{pynet_forward.1} parent=1 // pred_check
      _
    $region3: #{pynet_forward.1} parent=1 // pred_check_branch
      %15 = sbr.rel (0) target = $region5
    $region4: #{pynet_forward.1} parent=1 // pred_region
      _
    $region5: #{pynet_forward.1} parent=1 // pred_fallthru
      _
    // Predicated region
    $region6: #{pynet_forward.1} parent=1 // pred_check
      _
    $region7: #{pynet_forward.1} parent=1 // pred_check_branch
      %17 = sbr.rel (0) target = $region9
    $region8: #{pynet_forward.1} parent=1 // pred_region
      %s19 = ssub.s32 512, 512
      %20 = vsyncadd [#allocation6], %s19
      %s21 = sshll.u32 [#allocation5], 4
      %s22 = int_to_ptr.vmem [resolvable:$true] %s21
      %27 = dma.hbm_to_vmem [thread:$0]  %s1, 512, %s22, [#allocation6], 256, 256, 16
    $region9: #{pynet_forward.1} parent=1 // pred_fallthru
      _
    // Predicated region
    $region10: #{pynet_forward.1} parent=1 // pred_check
      _
    $region11: #{pynet_forward.1} parent=1 // pred_check_branch
      %29 = sbr.rel (0) target = $region13
    $region12: #{pynet_forward.1} parent=1 // pred_region
      _
    $region13: #{pynet_forward.1} parent=1 // pred_fallthru
      _
    // Predicated region
    $region14: #{pynet_forward.1} parent=1 // pred_check
      _
    $region15: #{pynet_forward.1} parent=1 // pred_check_branch
      %31 = sbr.rel (0) target = $region17
    $region16: #{pynet_forward.1} parent=1 // pred_region
      _
    $region17: #{pynet_forward.1} parent=1 // pred_fallthru
      _
    // Predicated region
    $region18: #{pynet_forward.1} parent=1 // pred_check
      _
    $region19: #{pynet_forward.1} parent=1 // pred_check_branch
      %33 = sbr.rel (0) target = $region21
    $region20: #{pynet_forward.1} parent=1 // pred_region
      _
    $region21: #{pynet_forward.1} parent=1 // pred_fallthru
      _
    // Predicated region
    $region22: #{pynet_forward.1} parent=1 // pred_check
      _
    $region23: #{pynet_forward.1} parent=1 // pred_check_branch
      %35 = sbr.rel (0) target = $region25
    $region24: #{pynet_forward.1} parent=1 // pred_region
      %s37 = ssub.s32 2048, 2048
      %38 = vsyncadd [#allocation8], %s37
      %s39 = sshll.u32 [#allocation7], 4
      %s40 = int_to_ptr.vmem [resolvable:$true] %s39
      %45 = dma.hbm_to_vmem [thread:$0]  %s5, 2048, %s40, [#allocation8], 128, 128, 8
    $region25: #{pynet_forward.1} parent=1 // pred_fallthru
      _
    // Predicated region
    $region26: #{pynet_forward.1} parent=1 // pred_check
      _
    $region27: #{pynet_forward.1} parent=1 // pred_check_branch
      %47 = sbr.rel (0) target = $region29
    $region28: #{pynet_forward.1} parent=1 // pred_region
      _
    $region29: #{pynet_forward.1} parent=1 // pred_fallthru
      _
    // Predicated region
    $region30: #{pynet_forward.1} parent=1 // pred_check
      _
    $region31: #{pynet_forward.1} parent=1 // pred_check_branch
      %49 = sbr.rel (0) target = $region33
    $region32: #{pynet_forward.1} parent=1 // pred_region
      %50 = dma.done [#allocation6], 512
    $region33: #{pynet_forward.1} parent=1 // pred_fallthru
      _
    // Predicated region
    $region34: #{pynet_forward.1} parent=1 // pred_check
      _
    $region35: #{pynet_forward.1} parent=1 // pred_check_branch
      %52 = sbr.rel (0) target = $region37
    $region36: #{pynet_forward.1} parent=1 // pred_region
      %53 = dma.done [#allocation8], 2048
    $region37: #{pynet_forward.1} parent=1 // pred_fallthru
      _
    %v55 = vld [vmem:[%s3] sm:$0xff]
    %v56 = vld [vmem:[%s3 + $0x8] sm:$0xff]
    %v57 = vld [vmem:[%s3 + $0x10] sm:$0xff]
    %v58 = vld [vmem:[%s3 + $0x18] sm:$0xff]
    %v59 = vld [vmem:[%s3 + $0x20] sm:$0xff]
    %v60 = vld [vmem:[%s3 + $0x28] sm:$0xff]
    %v61 = vld [vmem:[%s3 + $0x30] sm:$0xff]
    %v62 = vld [vmem:[%s3 + $0x38] sm:$0xff]
    %v63 = vld [vmem:[%s3 + $0x40] sm:$0xff]
    %v64 = vld [vmem:[%s3 + $0x48] sm:$0xff]
    %v65 = vld [vmem:[%s3 + $0x50] sm:$0xff]
    %v66 = vld [vmem:[%s3 + $0x58] sm:$0xff]
    %v67 = vld [vmem:[%s3 + $0x60] sm:$0xff]
    %v68 = vld [vmem:[%s3 + $0x68] sm:$0xff]
    %v69 = vld [vmem:[%s3 + $0x70] sm:$0xff]
    %v70 = vld [vmem:[%s3 + $0x78] sm:$0xff]
    %v71 = vld [vmem:[%s3 + $0x80] sm:$0xff]
    %v72 = vld [vmem:[%s3 + $0x88] sm:$0xff]
    %v73 = vld [vmem:[%s3 + $0x90] sm:$0xff]
    %v74 = vld [vmem:[%s3 + $0x98] sm:$0xff]
    %v75 = vld [vmem:[%s3 + $0xa0] sm:$0xff]
    %v76 = vld [vmem:[%s3 + $0xa8] sm:$0xff]
    %v77 = vld [vmem:[%s3 + $0xb0] sm:$0xff]
    %v78 = vld [vmem:[%s3 + $0xb8] sm:$0xff]
    %v79 = vld [vmem:[%s3 + $0xc0] sm:$0xff]
    %v80 = vld [vmem:[%s3 + $0xc8] sm:$0xff]
    %v81 = vld [vmem:[%s3 + $0xd0] sm:$0xff]
    %v82 = vld [vmem:[%s3 + $0xd8] sm:$0xff]
    %v83 = vld [vmem:[%s3 + $0xe0] sm:$0xff]
    %v84 = vld [vmem:[%s3 + $0xe8] sm:$0xff]
    %v85 = vld [vmem:[%s3 + $0xf0] sm:$0xff]
    %v86 = vld [vmem:[%s3 + $0xf8] sm:$0xff]
    %v87 = vld [vmem:[%s0] sm:$0xf]
    %v88 = vld [vmem:[%s0 + $0x4] sm:$0xf]
    %v89 = vld [vmem:[%s0 + $0x8] sm:$0xf]
    %v90 = vld [vmem:[%s0 + $0xc] sm:$0xf]
    %v91 = vld [vmem:[%s0 + $0x10] sm:$0xf]
    %v92 = vld [vmem:[%s0 + $0x14] sm:$0xf]
    %v93 = vld [vmem:[%s0 + $0x18] sm:$0xf]
    %v94 = vld [vmem:[%s0 + $0x1c] sm:$0xf]
    %v95 = vld [vmem:[#allocation5] sm:$0xff]
    %v96 = vld [vmem:[#allocation5 + $0x8] sm:$0xff]
    %v97 = vld [vmem:[#allocation5 + $0x10] sm:$0xff]
    %v98 = vld [vmem:[#allocation5 + $0x18] sm:$0xff]
    %v99 = vld [vmem:[%s2] sm:$0xf]
    %v101 = vlaneseq
    %v102 = vshrl.u32 %v101, 7
    %v103 = vsub.s32 0, %v102
    %v104 = vrot.slane %v99, %v103
    %v105 = vlaneseq
    %v106 = vshrl.u32 %v105, 7
    %v107 = vsub.s32 1, %v106
    %v108 = vrot.slane %v99, %v107
    %v109 = vlaneseq
    %v110 = vshrl.u32 %v109, 7
    %v111 = vsub.s32 2, %v110
    %v112 = vrot.slane %v99, %v111
    %v113 = vlaneseq
    %v114 = vshrl.u32 %v113, 7
    %v115 = vsub.s32 3, %v114
    %v116 = vrot.slane %v99, %v115
    %v129 = vunpack.c.l.b16 %v87
    %v130 = vunpack.c.l.b16 %v88
    %v131 = vunpack.c.l.b16 %v89
    %v132 = vunpack.c.l.b16 %v90
    %v133 = vunpack.c.l.b16 %v91
    %v134 = vunpack.c.l.b16 %v92
    %v135 = vunpack.c.l.b16 %v93
    %v136 = vunpack.c.l.b16 %v94
    %v137 = vpack.c.b16 %v130, %v129
    %v138 = vpack.c.b16 %v132, %v131
    %v139 = vpack.c.b16 %v134, %v133
    %v140 = vpack.c.b16 %v136, %v135
    %v145 = vunpack.c.l.b16 %v95
    %v146 = vunpack.c.h.b16 %v95
    %v147 = vunpack.c.l.b16 %v96
    %v148 = vunpack.c.h.b16 %v96
    %v149 = vunpack.c.l.b16 %v97
    %v150 = vunpack.c.h.b16 %v97
    %v151 = vunpack.c.l.b16 %v98
    %v152 = vunpack.c.h.b16 %v98
    %v153 = vpack.c.b16 %v149, %v145
    %v154 = vpack.c.b16 %v150, %v146
    %v155 = vpack.c.b16 %v151, %v147
    %v156 = vpack.c.b16 %v152, %v148
    %vm161 = vcmask 130048
    %v163 = vsel %vm161, %v137, 0
    %v166 = vsel %vm161, %v138, 0
    %v169 = vsel %vm161, %v139, 0
    %v172 = vsel %vm161, %v140, 0
    %174 = vmatprep.subr.bf16.mxu0 %v154
    %175 = vmatpush1.bf16.msra.mxu0 %v153
    %176 = vmatprep.subr.bf16.mxu0 0
    %177 = vmatpush1.bf16.msra.mxu0 0
    %178 = vmatprep.subr.bf16.mxu0 0
    %179 = vmatpush1.bf16.msra.mxu0 0
    %180 = vmatprep.subr.bf16.mxu0 0
    %181 = vmatpush1.bf16.msra.mxu0 0
    %182 = vmatprep.subr.bf16.mxu0 0
    %183 = vmatpush1.bf16.msra.mxu0 0
    %184 = vmatprep.subr.bf16.mxu0 0
    %185 = vmatpush1.bf16.msra.mxu0 0
    %186 = vmatprep.subr.bf16.mxu0 0
    %187 = vmatpush1.bf16.msra.mxu0 0
    %188 = vmatprep.subr.bf16.mxu0 0
    %189 = vmatpush1.bf16.msra.mxu0 0
    %190 = vmatprep.subr.bf16.mxu0 0
    %191 = vmatpush1.bf16.msra.mxu0 0
    %192 = vmatprep.subr.bf16.mxu0 0
    %193 = vmatpush1.bf16.msra.mxu0 0
    %194 = vmatprep.subr.bf16.mxu0 0
    %195 = vmatpush1.bf16.msra.mxu0 0
    %196 = vmatprep.subr.bf16.mxu0 0
    %197 = vmatpush1.bf16.msra.mxu0 0
    %198 = vmatprep.subr.bf16.mxu0 0
    %199 = vmatpush1.bf16.msra.mxu0 0
    %200 = vmatprep.subr.bf16.mxu0 0
    %201 = vmatpush1.bf16.msra.mxu0 0
    %202 = vmatprep.subr.bf16.mxu0 0
    %203 = vmatpush1.bf16.msra.mxu0 0
    %204 = vmatprep.subr.bf16.mxu0 0
    %205 = vmatpush1.bf16.msra.mxu0 0
    %206 = vmatprep.mubr.bf16.mxu0 0
    %207 = vmatmul.mubr.bf16.gmra.mrb[0].mxu0 %v163
    %v208 = vpop.f32.mrb[0].mxu0
    %v209 = vadd.f32 %v104, %v208
    %v210 = vpop.f32.mrb[0].mxu0
    %v211 = vadd.f32 %v108, %v210
    %v212 = vpop.f32.mrb[0].mxu0
    %v213 = vadd.f32 %v104, %v212
    %v214 = vpop.f32.mrb[0].mxu0
    %v215 = vadd.f32 %v108, %v214
    %216 = vmatprep.mubr.bf16.mxu0 0
    %217 = vmatmul.mubr.bf16.gmra.mrb[0].mxu0 %v166
    %v218 = vpop.f32.mrb[0].mxu0
    %v219 = vadd.f32 %v104, %v218
    %v220 = vpop.f32.mrb[0].mxu0
    %v221 = vadd.f32 %v108, %v220
    %v222 = vpop.f32.mrb[0].mxu0
    %v223 = vadd.f32 %v104, %v222
    %v224 = vpop.f32.mrb[0].mxu0
    %v225 = vadd.f32 %v108, %v224
    %226 = vmatprep.mubr.bf16.mxu0 0
    %227 = vmatmul.mubr.bf16.gmra.mrb[0].mxu0 %v169
    %v228 = vpop.f32.mrb[0].mxu0
    %v229 = vadd.f32 %v104, %v228
    %v230 = vpop.f32.mrb[0].mxu0
    %v231 = vadd.f32 %v108, %v230
    %v232 = vpop.f32.mrb[0].mxu0
    %v233 = vadd.f32 %v104, %v232
    %v234 = vpop.f32.mrb[0].mxu0
    %v235 = vadd.f32 %v108, %v234
    %236 = vmatprep.mubr.bf16.mxu0 0
    %237 = vmatmul.mubr.bf16.gmra.mrb[0].mxu0 %v172
    %v238 = vpop.f32.mrb[0].mxu0
    %v239 = vadd.f32 %v104, %v238
    %v240 = vpop.f32.mrb[0].mxu0
    %v241 = vadd.f32 %v108, %v240
    %v242 = vpop.f32.mrb[0].mxu0
    %v243 = vadd.f32 %v104, %v242
    %v244 = vpop.f32.mrb[0].mxu0
    %v245 = vadd.f32 %v108, %v244
    %246 = vdwg.mxu0
    %247 = vmatprep.subr.bf16.mxu0 %v156
    %248 = vmatpush1.bf16.msra.mxu0 %v155
    %249 = vmatprep.subr.bf16.mxu0 0
    %250 = vmatpush1.bf16.msra.mxu0 0
    %251 = vmatprep.subr.bf16.mxu0 0
    %252 = vmatpush1.bf16.msra.mxu0 0
    %253 = vmatprep.subr.bf16.mxu0 0
    %254 = vmatpush1.bf16.msra.mxu0 0
    %255 = vmatprep.subr.bf16.mxu0 0
    %256 = vmatpush1.bf16.msra.mxu0 0
    %257 = vmatprep.subr.bf16.mxu0 0
    %258 = vmatpush1.bf16.msra.mxu0 0
    %259 = vmatprep.subr.bf16.mxu0 0
    %260 = vmatpush1.bf16.msra.mxu0 0
    %261 = vmatprep.subr.bf16.mxu0 0
    %262 = vmatpush1.bf16.msra.mxu0 0
    %263 = vmatprep.subr.bf16.mxu0 0
    %264 = vmatpush1.bf16.msra.mxu0 0
    %265 = vmatprep.subr.bf16.mxu0 0
    %266 = vmatpush1.bf16.msra.mxu0 0
    %267 = vmatprep.subr.bf16.mxu0 0
    %268 = vmatpush1.bf16.msra.mxu0 0
    %269 = vmatprep.subr.bf16.mxu0 0
    %270 = vmatpush1.bf16.msra.mxu0 0
    %271 = vmatprep.subr.bf16.mxu0 0
    %272 = vmatpush1.bf16.msra.mxu0 0
    %273 = vmatprep.subr.bf16.mxu0 0
    %274 = vmatpush1.bf16.msra.mxu0 0
    %275 = vmatprep.subr.bf16.mxu0 0
    %276 = vmatpush1.bf16.msra.mxu0 0
    %277 = vmatprep.subr.bf16.mxu0 0
    %278 = vmatpush1.bf16.msra.mxu0 0
    %279 = vmatprep.mubr.bf16.mxu0 0
    %280 = vmatmul.mubr.bf16.gmra.mrb[0].mxu0 %v163
    %v281 = vpop.f32.mrb[0].mxu0
    %v282 = vadd.f32 %v112, %v281
    %v283 = vpop.f32.mrb[0].mxu0
    %v284 = vadd.f32 %v116, %v283
    %v285 = vpop.f32.mrb[0].mxu0
    %v286 = vadd.f32 %v112, %v285
    %v287 = vpop.f32.mrb[0].mxu0
    %v288 = vadd.f32 %v116, %v287
    %289 = vmatprep.mubr.bf16.mxu0 0
    %290 = vmatmul.mubr.bf16.gmra.mrb[0].mxu0 %v166
    %v291 = vpop.f32.mrb[0].mxu0
    %v292 = vadd.f32 %v112, %v291
    %v293 = vpop.f32.mrb[0].mxu0
    %v294 = vadd.f32 %v116, %v293
    %v295 = vpop.f32.mrb[0].mxu0
    %v296 = vadd.f32 %v112, %v295
    %v297 = vpop.f32.mrb[0].mxu0
    %v298 = vadd.f32 %v116, %v297
    %299 = vmatprep.mubr.bf16.mxu0 0
    %300 = vmatmul.mubr.bf16.gmra.mrb[0].mxu0 %v169
    %v301 = vpop.f32.mrb[0].mxu0
    %v302 = vadd.f32 %v112, %v301
    %v303 = vpop.f32.mrb[0].mxu0
    %v304 = vadd.f32 %v116, %v303
    %v305 = vpop.f32.mrb[0].mxu0
    %v306 = vadd.f32 %v112, %v305
    %v307 = vpop.f32.mrb[0].mxu0
    %v308 = vadd.f32 %v116, %v307
    %309 = vmatprep.mubr.bf16.mxu0 0
    %310 = vmatmul.mubr.bf16.gmra.mrb[0].mxu0 %v172
    %v311 = vpop.f32.mrb[0].mxu0
    %v312 = vadd.f32 %v112, %v311
    %v313 = vpop.f32.mrb[0].mxu0
    %v314 = vadd.f32 %v116, %v313
    %v315 = vpop.f32.mrb[0].mxu0
    %v316 = vadd.f32 %v112, %v315
    %v317 = vpop.f32.mrb[0].mxu0
    %v318 = vadd.f32 %v116, %v317
    %319 = vdwg.mxu0
    %320 = vst [vmem:[#allocation2] sm:$0xff] %v209
    %321 = vst [vmem:[#allocation2 + $0x8] sm:$0xff] %v211
    %322 = vst [vmem:[#allocation2 + $0x10] sm:$0xff] %v282
    %323 = vst [vmem:[#allocation2 + $0x18] sm:$0xff] %v284
    %324 = vst [vmem:[#allocation2 + $0x20] sm:$0xff] %v213
    %325 = vst [vmem:[#allocation2 + $0x28] sm:$0xff] %v215
    %326 = vst [vmem:[#allocation2 + $0x30] sm:$0xff] %v286
    %327 = vst [vmem:[#allocation2 + $0x38] sm:$0xff] %v288
    %328 = vst [vmem:[#allocation2 + $0x40] sm:$0xff] %v219
    %329 = vst [vmem:[#allocation2 + $0x48] sm:$0xff] %v221
    %330 = vst [vmem:[#allocation2 + $0x50] sm:$0xff] %v292
    %331 = vst [vmem:[#allocation2 + $0x58] sm:$0xff] %v294
    %332 = vst [vmem:[#allocation2 + $0x60] sm:$0xff] %v223
    %333 = vst [vmem:[#allocation2 + $0x68] sm:$0xff] %v225
    %334 = vst [vmem:[#allocation2 + $0x70] sm:$0xff] %v296
    %335 = vst [vmem:[#allocation2 + $0x78] sm:$0xff] %v298
    %336 = vst [vmem:[#allocation2 + $0x80] sm:$0xff] %v229
    %337 = vst [vmem:[#allocation2 + $0x88] sm:$0xff] %v231
    %338 = vst [vmem:[#allocation2 + $0x90] sm:$0xff] %v302
    %339 = vst [vmem:[#allocation2 + $0x98] sm:$0xff] %v304
    %340 = vst [vmem:[#allocation2 + $0xa0] sm:$0xff] %v233
    %341 = vst [vmem:[#allocation2 + $0xa8] sm:$0xff] %v235
    %342 = vst [vmem:[#allocation2 + $0xb0] sm:$0xff] %v306
    %343 = vst [vmem:[#allocation2 + $0xb8] sm:$0xff] %v308
    %344 = vst [vmem:[#allocation2 + $0xc0] sm:$0xff] %v239
    %345 = vst [vmem:[#allocation2 + $0xc8] sm:$0xff] %v241
    %346 = vst [vmem:[#allocation2 + $0xd0] sm:$0xff] %v312
    %347 = vst [vmem:[#allocation2 + $0xd8] sm:$0xff] %v314
    %348 = vst [vmem:[#allocation2 + $0xe0] sm:$0xff] %v243
    %349 = vst [vmem:[#allocation2 + $0xe8] sm:$0xff] %v245
    %350 = vst [vmem:[#allocation2 + $0xf0] sm:$0xff] %v316
    %351 = vst [vmem:[#allocation2 + $0xf8] sm:$0xff] %v318
    %s352 = smul.u32 0, 4
    %s353 = smul.addr %s352, 8
    %s354 = scalar_lea.vmem [#allocation2], %s353
    %v355 = vld [vmem:[%s354] sm:$0xff]
    %v356 = vld [vmem:[%s354 + $0x8] sm:$0xff]
    %v357 = vld [vmem:[%s354 + $0x10] sm:$0xff]
    %v358 = vld [vmem:[%s354 + $0x18] sm:$0xff]
    %v391 = vunpack.c.l.b16 %v55
    %v392 = vunpack.c.h.b16 %v55
    %v393 = vunpack.c.l.b16 %v56
    %v394 = vunpack.c.h.b16 %v56
    %v395 = vunpack.c.l.b16 %v57
    %v396 = vunpack.c.h.b16 %v57
    %v397 = vunpack.c.l.b16 %v58
    %v398 = vunpack.c.h.b16 %v58
    %v399 = vunpack.c.l.b16 %v59
    %v400 = vunpack.c.h.b16 %v59
    %v401 = vunpack.c.l.b16 %v60
    %v402 = vunpack.c.h.b16 %v60
    %v403 = vunpack.c.l.b16 %v61
    %v404 = vunpack.c.h.b16 %v61
    %v405 = vunpack.c.l.b16 %v62
    %v406 = vunpack.c.h.b16 %v62
    %v407 = vunpack.c.l.b16 %v63
    %v408 = vunpack.c.h.b16 %v63
    %v409 = vunpack.c.l.b16 %v64
    %v410 = vunpack.c.h.b16 %v64
    %v411 = vunpack.c.l.b16 %v65
    %v412 = vunpack.c.h.b16 %v65
    %v413 = vunpack.c.l.b16 %v66
    %v414 = vunpack.c.h.b16 %v66
    %v415 = vunpack.c.l.b16 %v67
    %v416 = vunpack.c.h.b16 %v67
    %v417 = vunpack.c.l.b16 %v68
    %v418 = vunpack.c.h.b16 %v68
    %v419 = vunpack.c.l.b16 %v69
    %v420 = vunpack.c.h.b16 %v69
    %v421 = vunpack.c.l.b16 %v70
    %v422 = vunpack.c.h.b16 %v70
    %v423 = vunpack.c.l.b16 %v71
    %v424 = vunpack.c.h.b16 %v71
    %v425 = vunpack.c.l.b16 %v72
    %v426 = vunpack.c.h.b16 %v72
    %v427 = vunpack.c.l.b16 %v73
    %v428 = vunpack.c.h.b16 %v73
    %v429 = vunpack.c.l.b16 %v74
    %v430 = vunpack.c.h.b16 %v74
    %v431 = vunpack.c.l.b16 %v75
    %v432 = vunpack.c.h.b16 %v75
    %v433 = vunpack.c.l.b16 %v76
    %v434 = vunpack.c.h.b16 %v76
    %v435 = vunpack.c.l.b16 %v77
    %v436 = vunpack.c.h.b16 %v77
    %v437 = vunpack.c.l.b16 %v78
    %v438 = vunpack.c.h.b16 %v78
    %v439 = vunpack.c.l.b16 %v79
    %v440 = vunpack.c.h.b16 %v79
    %v441 = vunpack.c.l.b16 %v80
    %v442 = vunpack.c.h.b16 %v80
    %v443 = vunpack.c.l.b16 %v81
    %v444 = vunpack.c.h.b16 %v81
    %v445 = vunpack.c.l.b16 %v82
    %v446 = vunpack.c.h.b16 %v82
    %v447 = vunpack.c.l.b16 %v83
    %v448 = vunpack.c.h.b16 %v83
    %v449 = vunpack.c.l.b16 %v84
    %v450 = vunpack.c.h.b16 %v84
    %v451 = vunpack.c.l.b16 %v85
    %v452 = vunpack.c.h.b16 %v85
    %v453 = vunpack.c.l.b16 %v86
    %v454 = vunpack.c.h.b16 %v86
    %v455 = vpack.c.b16 %v395, %v391
    %v456 = vpack.c.b16 %v396, %v392
    %v457 = vpack.c.b16 %v397, %v393
    %v458 = vpack.c.b16 %v398, %v394
    %v459 = vpack.c.b16 %v403, %v399
    %v460 = vpack.c.b16 %v404, %v400
    %v461 = vpack.c.b16 %v405, %v401
    %v462 = vpack.c.b16 %v406, %v402
    %v463 = vpack.c.b16 %v411, %v407
    %v464 = vpack.c.b16 %v412, %v408
    %v465 = vpack.c.b16 %v413, %v409
    %v466 = vpack.c.b16 %v414, %v410
    %v467 = vpack.c.b16 %v419, %v415
    %v468 = vpack.c.b16 %v420, %v416
    %v469 = vpack.c.b16 %v421, %v417
    %v470 = vpack.c.b16 %v422, %v418
    %v471 = vpack.c.b16 %v427, %v423
    %v472 = vpack.c.b16 %v428, %v424
    %v473 = vpack.c.b16 %v429, %v425
    %v474 = vpack.c.b16 %v430, %v426
    %v475 = vpack.c.b16 %v435, %v431
    %v476 = vpack.c.b16 %v436, %v432
    %v477 = vpack.c.b16 %v437, %v433
    %v478 = vpack.c.b16 %v438, %v434
    %v479 = vpack.c.b16 %v443, %v439
    %v480 = vpack.c.b16 %v444, %v440
    %v481 = vpack.c.b16 %v445, %v441
    %v482 = vpack.c.b16 %v446, %v442
    %v483 = vpack.c.b16 %v451, %v447
    %v484 = vpack.c.b16 %v452, %v448
    %v485 = vpack.c.b16 %v453, %v449
    %v486 = vpack.c.b16 %v454, %v450
    %519 = vmatprep.subr.bf16.mxu0 %v456
    %520 = vmatpush1.bf16.msra.mxu0 %v455
    %521 = vmatprep.subr.bf16.mxu0 %v460
    %522 = vmatpush1.bf16.msra.mxu0 %v459
    %523 = vmatprep.subr.bf16.mxu0 %v464
    %524 = vmatpush1.bf16.msra.mxu0 %v463
    %525 = vmatprep.subr.bf16.mxu0 %v468
    %526 = vmatpush1.bf16.msra.mxu0 %v467
    %527 = vmatprep.subr.bf16.mxu0 %v472
    %528 = vmatpush1.bf16.msra.mxu0 %v471
    %529 = vmatprep.subr.bf16.mxu0 %v476
    %530 = vmatpush1.bf16.msra.mxu0 %v475
    %531 = vmatprep.subr.bf16.mxu0 %v480
    %532 = vmatpush1.bf16.msra.mxu0 %v479
    %533 = vmatprep.subr.bf16.mxu0 %v484
    %534 = vmatpush1.bf16.msra.mxu0 %v483
    %535 = vmatprep.subr.bf16.mxu0 0
    %536 = vmatpush1.bf16.msra.mxu0 0
    %537 = vmatprep.subr.bf16.mxu0 0
    %538 = vmatpush1.bf16.msra.mxu0 0
    %539 = vmatprep.subr.bf16.mxu0 0
    %540 = vmatpush1.bf16.msra.mxu0 0
    %541 = vmatprep.subr.bf16.mxu0 0
    %542 = vmatpush1.bf16.msra.mxu0 0
    %543 = vmatprep.subr.bf16.mxu0 0
    %544 = vmatpush1.bf16.msra.mxu0 0
    %545 = vmatprep.subr.bf16.mxu0 0
    %546 = vmatpush1.bf16.msra.mxu0 0
    %547 = vmatprep.subr.bf16.mxu0 0
    %548 = vmatpush1.bf16.msra.mxu0 0
    %549 = vmatprep.subr.bf16.mxu0 0
    %550 = vmatpush1.bf16.msra.mxu0 0
    %551 = vmatprep.mubr.bf16.mxu0 0
    %552 = vmatmul.mubr.bf16.gmra.mrb[0].mxu0 0
    %v553 = vpop.f32.mrb[0].mxu0
    %v554 = vadd.f32 0.0, %v553
    %v555 = vpop.f32.mrb[0].mxu0
    %v556 = vadd.f32 0.0, %v555
    %v557 = vpop.f32.mrb[0].mxu0
    %v558 = vpop.f32.mrb[0].mxu0
    %559 = vdwg.mxu0
    %560 = vmatprep.subr.bf16.mxu0 %v458
    %561 = vmatpush1.bf16.msra.mxu0 %v457
    %562 = vmatprep.subr.bf16.mxu0 %v462
    %563 = vmatpush1.bf16.msra.mxu0 %v461
    %564 = vmatprep.subr.bf16.mxu0 %v466
    %565 = vmatpush1.bf16.msra.mxu0 %v465
    %566 = vmatprep.subr.bf16.mxu0 %v470
    %567 = vmatpush1.bf16.msra.mxu0 %v469
    %568 = vmatprep.subr.bf16.mxu0 %v474
    %569 = vmatpush1.bf16.msra.mxu0 %v473
    %570 = vmatprep.subr.bf16.mxu0 %v478
    %571 = vmatpush1.bf16.msra.mxu0 %v477
    %572 = vmatprep.subr.bf16.mxu0 %v482
    %573 = vmatpush1.bf16.msra.mxu0 %v481
    %574 = vmatprep.subr.bf16.mxu0 %v486
    %575 = vmatpush1.bf16.msra.mxu0 %v485
    %576 = vmatprep.subr.bf16.mxu0 0
    %577 = vmatpush1.bf16.msra.mxu0 0
    %578 = vmatprep.subr.bf16.mxu0 0
    %579 = vmatpush1.bf16.msra.mxu0 0
    %580 = vmatprep.subr.bf16.mxu0 0
    %581 = vmatpush1.bf16.msra.mxu0 0
    %582 = vmatprep.subr.bf16.mxu0 0
    %583 = vmatpush1.bf16.msra.mxu0 0
    %584 = vmatprep.subr.bf16.mxu0 0
    %585 = vmatpush1.bf16.msra.mxu0 0
    %586 = vmatprep.subr.bf16.mxu0 0
    %587 = vmatpush1.bf16.msra.mxu0 0
    %588 = vmatprep.subr.bf16.mxu0 0
    %589 = vmatpush1.bf16.msra.mxu0 0
    %590 = vmatprep.subr.bf16.mxu0 0
    %591 = vmatpush1.bf16.msra.mxu0 0
    %592 = vmatprep.mubr.bf16.mxu0 0
    %593 = vmatmul.mubr.bf16.gmra.mrb[0].mxu0 0
    %v594 = vpop.f32.mrb[0].mxu0
    %v595 = vadd.f32 0.0, %v594
    %v596 = vpop.f32.mrb[0].mxu0
    %v597 = vadd.f32 0.0, %v596
    %v598 = vpop.f32.mrb[0].mxu0
    %v599 = vpop.f32.mrb[0].mxu0
    %600 = vdwg.mxu0
    %v601 = vadd.f32 %v355, %v554
    %v602 = vadd.f32 %v356, %v556
    %v603 = vadd.f32 %v357, %v595
    %v604 = vadd.f32 %v358, %v597
    %v605 = vxor.u32 %v601, 2147483648
    %v606 = vmul.f32 %v605, 1.442695
    %v607 = vpow.pop %v606
    %v608 = vadd.f32 %v607, 1.0
    %v609 = vrcp.pop %v608
    %v610 = vmul.f32 1.0, %v609
    %v611 = vxor.u32 %v602, 2147483648
    %v612 = vmul.f32 %v611, 1.442695
    %v613 = vpow.pop %v612
    %v614 = vadd.f32 %v613, 1.0
    %v615 = vrcp.pop %v614
    %v616 = vmul.f32 1.0, %v615
    %v617 = vtanh.pop %v603
    %v618 = vxor.u32 %v604, 2147483648
    %v619 = vmul.f32 %v618, 1.442695
    %v620 = vpow.pop %v619
    %v621 = vadd.f32 %v620, 1.0
    %v622 = vrcp.pop %v621
    %v623 = vmul.f32 1.0, %v622
    %v624 = vmul.f32 %v616, 0.0
    %v625 = vmul.f32 %v610, %v617
    %v626 = vadd.f32 %v624, %v625
    %v627 = vtanh.pop %v626
    %v628 = vmul.f32 %v623, %v627
    %629 = vst [vmem:[#allocation3] sm:$0xff] %v628
    %s630 = scalar_lea.vmem [#allocation4], 56
    %631 = vst [vmem:[%s630] sm:$0xff] %v628
    %s632 = smul.u32 1, 4
    %s633 = smul.addr %s632, 8
    %s634 = scalar_lea.vmem [#allocation2], %s633
    %v635 = vld [vmem:[%s634] sm:$0xff]
    %v636 = vld [vmem:[%s634 + $0x8] sm:$0xff]
    %v637 = vld [vmem:[%s634 + $0x10] sm:$0xff]
    %v638 = vld [vmem:[%s634 + $0x18] sm:$0xff]
    %v639 = vpack.c.bf16 %v628, %v628
    %640 = vmatprep.subr.bf16.mxu0 %v456
    %641 = vmatpush1.bf16.msra.mxu0 %v455
    %642 = vmatprep.subr.bf16.mxu0 %v460
    %643 = vmatpush1.bf16.msra.mxu0 %v459
    %644 = vmatprep.subr.bf16.mxu0 %v464
    %645 = vmatpush1.bf16.msra.mxu0 %v463
    %646 = vmatprep.subr.bf16.mxu0 %v468
    %647 = vmatpush1.bf16.msra.mxu0 %v467
    %648 = vmatprep.subr.bf16.mxu0 %v472
    %649 = vmatpush1.bf16.msra.mxu0 %v471
    %650 = vmatprep.subr.bf16.mxu0 %v476
    %651 = vmatpush1.bf16.msra.mxu0 %v475
    %652 = vmatprep.subr.bf16.mxu0 %v480
    %653 = vmatpush1.bf16.msra.mxu0 %v479
    %654 = vmatprep.subr.bf16.mxu0 %v484
    %655 = vmatpush1.bf16.msra.mxu0 %v483
    %656 = vmatprep.subr.bf16.mxu0 0
    %657 = vmatpush1.bf16.msra.mxu0 0
    %658 = vmatprep.subr.bf16.mxu0 0
    %659 = vmatpush1.bf16.msra.mxu0 0
    %660 = vmatprep.subr.bf16.mxu0 0
    %661 = vmatpush1.bf16.msra.mxu0 0
    %662 = vmatprep.subr.bf16.mxu0 0
    %663 = vmatpush1.bf16.msra.mxu0 0
    %664 = vmatprep.subr.bf16.mxu0 0
    %665 = vmatpush1.bf16.msra.mxu0 0
    %666 = vmatprep.subr.bf16.mxu0 0
    %667 = vmatpush1.bf16.msra.mxu0 0
    %668 = vmatprep.subr.bf16.mxu0 0
    %669 = vmatpush1.bf16.msra.mxu0 0
    %670 = vmatprep.subr.bf16.mxu0 0
    %671 = vmatpush1.bf16.msra.mxu0 0
    %672 = vmatprep.mubr.bf16.mxu0 0
    %673 = vmatmul.mubr.bf16.gmra.mrb[0].mxu0 %v639
    %v674 = vpop.f32.mrb[0].mxu0
    %v675 = vadd.f32 0.0, %v674
    %v676 = vpop.f32.mrb[0].mxu0
    %v677 = vadd.f32 0.0, %v676
    %v678 = vpop.f32.mrb[0].mxu0
    %v679 = vpop.f32.mrb[0].mxu0
    %680 = vdwg.mxu0
    %681 = vmatprep.subr.bf16.mxu0 %v458
    %682 = vmatpush1.bf16.msra.mxu0 %v457
    %683 = vmatprep.subr.bf16.mxu0 %v462
    %684 = vmatpush1.bf16.msra.mxu0 %v461
    %685 = vmatprep.subr.bf16.mxu0 %v466
    %686 = vmatpush1.bf16.msra.mxu0 %v465
    %687 = vmatprep.subr.bf16.mxu0 %v470
    %688 = vmatpush1.bf16.msra.mxu0 %v469
    %689 = vmatprep.subr.bf16.mxu0 %v474
    %690 = vmatpush1.bf16.msra.mxu0 %v473
    %691 = vmatprep.subr.bf16.mxu0 %v478
    %692 = vmatpush1.bf16.msra.mxu0 %v477
    %693 = vmatprep.subr.bf16.mxu0 %v482
    %694 = vmatpush1.bf16.msra.mxu0 %v481
    %695 = vmatprep.subr.bf16.mxu0 %v486
    %696 = vmatpush1.bf16.msra.mxu0 %v485
    %697 = vmatprep.subr.bf16.mxu0 0
    %698 = vmatpush1.bf16.msra.mxu0 0
    %699 = vmatprep.subr.bf16.mxu0 0
    %700 = vmatpush1.bf16.msra.mxu0 0
    %701 = vmatprep.subr.bf16.mxu0 0
    %702 = vmatpush1.bf16.msra.mxu0 0
    %703 = vmatprep.subr.bf16.mxu0 0
    %704 = vmatpush1.bf16.msra.mxu0 0
    %705 = vmatprep.subr.bf16.mxu0 0
    %706 = vmatpush1.bf16.msra.mxu0 0
    %707 = vmatprep.subr.bf16.mxu0 0
    %708 = vmatpush1.bf16.msra.mxu0 0
    %709 = vmatprep.subr.bf16.mxu0 0
    %710 = vmatpush1.bf16.msra.mxu0 0
    %711 = vmatprep.subr.bf16.mxu0 0
    %712 = vmatpush1.bf16.msra.mxu0 0
    %713 = vmatprep.mubr.bf16.mxu0 0
    %714 = vmatmul.mubr.bf16.gmra.mrb[0].mxu0 %v639
    %v715 = vpop.f32.mrb[0].mxu0
    %v716 = vadd.f32 0.0, %v715
    %v717 = vpop.f32.mrb[0].mxu0
    %v718 = vadd.f32 0.0, %v717
    %v719 = vpop.f32.mrb[0].mxu0
    %v720 = vpop.f32.mrb[0].mxu0
    %721 = vdwg.mxu0
    %v722 = vadd.f32 %v635, %v675
    %v723 = vadd.f32 %v636, %v677
    %v724 = vadd.f32 %v637, %v716
    %v725 = vadd.f32 %v638, %v718
    %v726 = vxor.u32 %v722, 2147483648
    %v727 = vmul.f32 %v726, 1.442695
    %v728 = vpow.pop %v727
    %v729 = vadd.f32 %v728, 1.0
    %v730 = vrcp.pop %v729
    %v731 = vmul.f32 1.0, %v730
    %v732 = vxor.u32 %v723, 2147483648
    %v733 = vmul.f32 %v732, 1.442695
    %v734 = vpow.pop %v733
    %v735 = vadd.f32 %v734, 1.0
    %v736 = vrcp.pop %v735
    %v737 = vmul.f32 1.0, %v736
    %v738 = vtanh.pop %v724
    %v739 = vxor.u32 %v725, 2147483648
    %v740 = vmul.f32 %v739, 1.442695
    %v741 = vpow.pop %v740
    %v742 = vadd.f32 %v741, 1.0
    %v743 = vrcp.pop %v742
    %v744 = vmul.f32 1.0, %v743
    %v745 = vmul.f32 %v737, %v626
    %v746 = vmul.f32 %v731, %v738
    %v747 = vadd.f32 %v745, %v746
    %v748 = vtanh.pop %v747
    %v749 = vmul.f32 %v744, %v748
    %s750 = scalar_lea.vmem [#allocation3], 8
    %751 = vst [vmem:[%s750] sm:$0xff] %v749
    %s752 = scalar_lea.vmem [#allocation4], 48
    %753 = vst [vmem:[%s752] sm:$0xff] %v749
    %s754 = smul.u32 2, 4
    %s755 = smul.addr %s754, 8
    %s756 = scalar_lea.vmem [#allocation2], %s755
    %v757 = vld [vmem:[%s756] sm:$0xff]
    %v758 = vld [vmem:[%s756 + $0x8] sm:$0xff]
    %v759 = vld [vmem:[%s756 + $0x10] sm:$0xff]
    %v760 = vld [vmem:[%s756 + $0x18] sm:$0xff]
    %v761 = vpack.c.bf16 %v749, %v749
    %762 = vmatprep.subr.bf16.mxu0 %v456
    %763 = vmatpush1.bf16.msra.mxu0 %v455
    %764 = vmatprep.subr.bf16.mxu0 %v460
    %765 = vmatpush1.bf16.msra.mxu0 %v459
    %766 = vmatprep.subr.bf16.mxu0 %v464
    %767 = vmatpush1.bf16.msra.mxu0 %v463
    %768 = vmatprep.subr.bf16.mxu0 %v468
    %769 = vmatpush1.bf16.msra.mxu0 %v467
    %770 = vmatprep.subr.bf16.mxu0 %v472
    %771 = vmatpush1.bf16.msra.mxu0 %v471
    %772 = vmatprep.subr.bf16.mxu0 %v476
    %773 = vmatpush1.bf16.msra.mxu0 %v475
    %774 = vmatprep.subr.bf16.mxu0 %v480
    %775 = vmatpush1.bf16.msra.mxu0 %v479
    %776 = vmatprep.subr.bf16.mxu0 %v484
    %777 = vmatpush1.bf16.msra.mxu0 %v483
    %778 = vmatprep.subr.bf16.mxu0 0
    %779 = vmatpush1.bf16.msra.mxu0 0
    %780 = vmatprep.subr.bf16.mxu0 0
    %781 = vmatpush1.bf16.msra.mxu0 0
    %782 = vmatprep.subr.bf16.mxu0 0
    %783 = vmatpush1.bf16.msra.mxu0 0
    %784 = vmatprep.subr.bf16.mxu0 0
    %785 = vmatpush1.bf16.msra.mxu0 0
    %786 = vmatprep.subr.bf16.mxu0 0
    %787 = vmatpush1.bf16.msra.mxu0 0
    %788 = vmatprep.subr.bf16.mxu0 0
    %789 = vmatpush1.bf16.msra.mxu0 0
    %790 = vmatprep.subr.bf16.mxu0 0
    %791 = vmatpush1.bf16.msra.mxu0 0
    %792 = vmatprep.subr.bf16.mxu0 0
    %793 = vmatpush1.bf16.msra.mxu0 0
    %794 = vmatprep.mubr.bf16.mxu0 0
    %795 = vmatmul.mubr.bf16.gmra.mrb[0].mxu0 %v761
    %v796 = vpop.f32.mrb[0].mxu0
    %v797 = vadd.f32 0.0, %v796
    %v798 = vpop.f32.mrb[0].mxu0
    %v799 = vadd.f32 0.0, %v798
    %v800 = vpop.f32.mrb[0].mxu0
    %v801 = vpop.f32.mrb[0].mxu0
    %802 = vdwg.mxu0
    %803 = vmatprep.subr.bf16.mxu0 %v458
    %804 = vmatpush1.bf16.msra.mxu0 %v457
    %805 = vmatprep.subr.bf16.mxu0 %v462
    %806 = vmatpush1.bf16.msra.mxu0 %v461
    %807 = vmatprep.subr.bf16.mxu0 %v466
    %808 = vmatpush1.bf16.msra.mxu0 %v465
    %809 = vmatprep.subr.bf16.mxu0 %v470
    %810 = vmatpush1.bf16.msra.mxu0 %v469
    %811 = vmatprep.subr.bf16.mxu0 %v474
    %812 = vmatpush1.bf16.msra.mxu0 %v473
    %813 = vmatprep.subr.bf16.mxu0 %v478
    %814 = vmatpush1.bf16.msra.mxu0 %v477
    %815 = vmatprep.subr.bf16.mxu0 %v482
    %816 = vmatpush1.bf16.msra.mxu0 %v481
    %817 = vmatprep.subr.bf16.mxu0 %v486
    %818 = vmatpush1.bf16.msra.mxu0 %v485
    %819 = vmatprep.subr.bf16.mxu0 0
    %820 = vmatpush1.bf16.msra.mxu0 0
    %821 = vmatprep.subr.bf16.mxu0 0
    %822 = vmatpush1.bf16.msra.mxu0 0
    %823 = vmatprep.subr.bf16.mxu0 0
    %824 = vmatpush1.bf16.msra.mxu0 0
    %825 = vmatprep.subr.bf16.mxu0 0
    %826 = vmatpush1.bf16.msra.mxu0 0
    %827 = vmatprep.subr.bf16.mxu0 0
    %828 = vmatpush1.bf16.msra.mxu0 0
    %829 = vmatprep.subr.bf16.mxu0 0
    %830 = vmatpush1.bf16.msra.mxu0 0
    %831 = vmatprep.subr.bf16.mxu0 0
    %832 = vmatpush1.bf16.msra.mxu0 0
    %833 = vmatprep.subr.bf16.mxu0 0
    %834 = vmatpush1.bf16.msra.mxu0 0
    %835 = vmatprep.mubr.bf16.mxu0 0
    %836 = vmatmul.mubr.bf16.gmra.mrb[0].mxu0 %v761
    %v837 = vpop.f32.mrb[0].mxu0
    %v838 = vadd.f32 0.0, %v837
    %v839 = vpop.f32.mrb[0].mxu0
    %v840 = vadd.f32 0.0, %v839
    %v841 = vpop.f32.mrb[0].mxu0
    %v842 = vpop.f32.mrb[0].mxu0
    %843 = vdwg.mxu0
    %v844 = vadd.f32 %v757, %v797
    %v845 = vadd.f32 %v758, %v799
    %v846 = vadd.f32 %v759, %v838
    %v847 = vadd.f32 %v760, %v840
    %v848 = vxor.u32 %v844, 2147483648
    %v849 = vmul.f32 %v848, 1.442695
    %v850 = vpow.pop %v849
    %v851 = vadd.f32 %v850, 1.0
    %v852 = vrcp.pop %v851
    %v853 = vmul.f32 1.0, %v852
    %v854 = vxor.u32 %v845, 2147483648
    %v855 = vmul.f32 %v854, 1.442695
    %v856 = vpow.pop %v855
    %v857 = vadd.f32 %v856, 1.0
    %v858 = vrcp.pop %v857
    %v859 = vmul.f32 1.0, %v858
    %v860 = vtanh.pop %v846
    %v861 = vxor.u32 %v847, 2147483648
    %v862 = vmul.f32 %v861, 1.442695
    %v863 = vpow.pop %v862
    %v864 = vadd.f32 %v863, 1.0
    %v865 = vrcp.pop %v864
    %v866 = vmul.f32 1.0, %v865
    %v867 = vmul.f32 %v859, %v747
    %v868 = vmul.f32 %v853, %v860
    %v869 = vadd.f32 %v867, %v868
    %v870 = vtanh.pop %v869
    %v871 = vmul.f32 %v866, %v870
    %s872 = scalar_lea.vmem [#allocation3], 16
    %873 = vst [vmem:[%s872] sm:$0xff] %v871
    %s874 = scalar_lea.vmem [#allocation4], 40
    %875 = vst [vmem:[%s874] sm:$0xff] %v871
    %s876 = smul.u32 3, 4
    %s877 = smul.addr %s876, 8
    %s878 = scalar_lea.vmem [#allocation2], %s877
    %v879 = vld [vmem:[%s878] sm:$0xff]
    %v880 = vld [vmem:[%s878 + $0x8] sm:$0xff]
    %v881 = vld [vmem:[%s878 + $0x10] sm:$0xff]
    %v882 = vld [vmem:[%s878 + $0x18] sm:$0xff]
    %v883 = vpack.c.bf16 %v871, %v871
    %884 = vmatprep.subr.bf16.mxu0 %v456
    %885 = vmatpush1.bf16.msra.mxu0 %v455
    %886 = vmatprep.subr.bf16.mxu0 %v460
    %887 = vmatpush1.bf16.msra.mxu0 %v459
    %888 = vmatprep.subr.bf16.mxu0 %v464
    %889 = vmatpush1.bf16.msra.mxu0 %v463
    %890 = vmatprep.subr.bf16.mxu0 %v468
    %891 = vmatpush1.bf16.msra.mxu0 %v467
    %892 = vmatprep.subr.bf16.mxu0 %v472
    %893 = vmatpush1.bf16.msra.mxu0 %v471
    %894 = vmatprep.subr.bf16.mxu0 %v476
    %895 = vmatpush1.bf16.msra.mxu0 %v475
    %896 = vmatprep.subr.bf16.mxu0 %v480
    %897 = vmatpush1.bf16.msra.mxu0 %v479
    %898 = vmatprep.subr.bf16.mxu0 %v484
    %899 = vmatpush1.bf16.msra.mxu0 %v483
    %900 = vmatprep.subr.bf16.mxu0 0
    %901 = vmatpush1.bf16.msra.mxu0 0
    %902 = vmatprep.subr.bf16.mxu0 0
    %903 = vmatpush1.bf16.msra.mxu0 0
    %904 = vmatprep.subr.bf16.mxu0 0
    %905 = vmatpush1.bf16.msra.mxu0 0
    %906 = vmatprep.subr.bf16.mxu0 0
    %907 = vmatpush1.bf16.msra.mxu0 0
    %908 = vmatprep.subr.bf16.mxu0 0
    %909 = vmatpush1.bf16.msra.mxu0 0
    %910 = vmatprep.subr.bf16.mxu0 0
    %911 = vmatpush1.bf16.msra.mxu0 0
    %912 = vmatprep.subr.bf16.mxu0 0
    %913 = vmatpush1.bf16.msra.mxu0 0
    %914 = vmatprep.subr.bf16.mxu0 0
    %915 = vmatpush1.bf16.msra.mxu0 0
    %916 = vmatprep.mubr.bf16.mxu0 0
    %917 = vmatmul.mubr.bf16.gmra.mrb[0].mxu0 %v883
    %v918 = vpop.f32.mrb[0].mxu0
    %v919 = vadd.f32 0.0, %v918
    %v920 = vpop.f32.mrb[0].mxu0
    %v921 = vadd.f32 0.0, %v920
    %v922 = vpop.f32.mrb[0].mxu0
    %v923 = vpop.f32.mrb[0].mxu0
    %924 = vdwg.mxu0
    %925 = vmatprep.subr.bf16.mxu0 %v458
    %926 = vmatpush1.bf16.msra.mxu0 %v457
    %927 = vmatprep.subr.bf16.mxu0 %v462
    %928 = vmatpush1.bf16.msra.mxu0 %v461
    %929 = vmatprep.subr.bf16.mxu0 %v466
    %930 = vmatpush1.bf16.msra.mxu0 %v465
    %931 = vmatprep.subr.bf16.mxu0 %v470
    %932 = vmatpush1.bf16.msra.mxu0 %v469
    %933 = vmatprep.subr.bf16.mxu0 %v474
    %934 = vmatpush1.bf16.msra.mxu0 %v473
    %935 = vmatprep.subr.bf16.mxu0 %v478
    %936 = vmatpush1.bf16.msra.mxu0 %v477
    %937 = vmatprep.subr.bf16.mxu0 %v482
    %938 = vmatpush1.bf16.msra.mxu0 %v481
    %939 = vmatprep.subr.bf16.mxu0 %v486
    %940 = vmatpush1.bf16.msra.mxu0 %v485
    %941 = vmatprep.subr.bf16.mxu0 0
    %942 = vmatpush1.bf16.msra.mxu0 0
    %943 = vmatprep.subr.bf16.mxu0 0
    %944 = vmatpush1.bf16.msra.mxu0 0
    %945 = vmatprep.subr.bf16.mxu0 0
    %946 = vmatpush1.bf16.msra.mxu0 0
    %947 = vmatprep.subr.bf16.mxu0 0
    %948 = vmatpush1.bf16.msra.mxu0 0
    %949 = vmatprep.subr.bf16.mxu0 0
    %950 = vmatpush1.bf16.msra.mxu0 0
    %951 = vmatprep.subr.bf16.mxu0 0
    %952 = vmatpush1.bf16.msra.mxu0 0
    %953 = vmatprep.subr.bf16.mxu0 0
    %954 = vmatpush1.bf16.msra.mxu0 0
    %955 = vmatprep.subr.bf16.mxu0 0
    %956 = vmatpush1.bf16.msra.mxu0 0
    %957 = vmatprep.mubr.bf16.mxu0 0
    %958 = vmatmul.mubr.bf16.gmra.mrb[0].mxu0 %v883
    %v959 = vpop.f32.mrb[0].mxu0
    %v960 = vadd.f32 0.0, %v959
    %v961 = vpop.f32.mrb[0].mxu0
    %v962 = vadd.f32 0.0, %v961
    %v963 = vpop.f32.mrb[0].mxu0
    %v964 = vpop.f32.mrb[0].mxu0
    %965 = vdwg.mxu0
    %v966 = vadd.f32 %v879, %v919
    %v967 = vadd.f32 %v880, %v921
    %v968 = vadd.f32 %v881, %v960
    %v969 = vadd.f32 %v882, %v962
    %v970 = vxor.u32 %v966, 2147483648
    %v971 = vmul.f32 %v970, 1.442695
    %v972 = vpow.pop %v971
    %v973 = vadd.f32 %v972, 1.0
    %v974 = vrcp.pop %v973
    %v975 = vmul.f32 1.0, %v974
    %v976 = vxor.u32 %v967, 2147483648
    %v977 = vmul.f32 %v976, 1.442695
    %v978 = vpow.pop %v977
    %v979 = vadd.f32 %v978, 1.0
    %v980 = vrcp.pop %v979
    %v981 = vmul.f32 1.0, %v980
    %v982 = vtanh.pop %v968
    %v983 = vxor.u32 %v969, 2147483648
    %v984 = vmul.f32 %v983, 1.442695
    %v985 = vpow.pop %v984
    %v986 = vadd.f32 %v985, 1.0
    %v987 = vrcp.pop %v986
    %v988 = vmul.f32 1.0, %v987
    %v989 = vmul.f32 %v981, %v869
    %v990 = vmul.f32 %v975, %v982
    %v991 = vadd.f32 %v989, %v990
    %v992 = vtanh.pop %v991
    %v993 = vmul.f32 %v988, %v992
    %s994 = scalar_lea.vmem [#allocation3], 24
    %995 = vst [vmem:[%s994] sm:$0xff] %v993
    %s996 = scalar_lea.vmem [#allocation4], 32
    %997 = vst [vmem:[%s996] sm:$0xff] %v993
    %s998 = smul.u32 4, 4
    %s999 = smul.addr %s998, 8
    %s1000 = scalar_lea.vmem [#allocation2], %s999
    %v1001 = vld [vmem:[%s1000] sm:$0xff]
    %v1002 = vld [vmem:[%s1000 + $0x8] sm:$0xff]
    %v1003 = vld [vmem:[%s1000 + $0x10] sm:$0xff]
    %v1004 = vld [vmem:[%s1000 + $0x18] sm:$0xff]
    %v1005 = vpack.c.bf16 %v993, %v993
    %1006 = vmatprep.subr.bf16.mxu0 %v456
    %1007 = vmatpush1.bf16.msra.mxu0 %v455
    %1008 = vmatprep.subr.bf16.mxu0 %v460
    %1009 = vmatpush1.bf16.msra.mxu0 %v459
    %1010 = vmatprep.subr.bf16.mxu0 %v464
    %1011 = vmatpush1.bf16.msra.mxu0 %v463
    %1012 = vmatprep.subr.bf16.mxu0 %v468
    %1013 = vmatpush1.bf16.msra.mxu0 %v467
    %1014 = vmatprep.subr.bf16.mxu0 %v472
    %1015 = vmatpush1.bf16.msra.mxu0 %v471
    %1016 = vmatprep.subr.bf16.mxu0 %v476
    %1017 = vmatpush1.bf16.msra.mxu0 %v475
    %1018 = vmatprep.subr.bf16.mxu0 %v480
    %1019 = vmatpush1.bf16.msra.mxu0 %v479
    %1020 = vmatprep.subr.bf16.mxu0 %v484
    %1021 = vmatpush1.bf16.msra.mxu0 %v483
    %1022 = vmatprep.subr.bf16.mxu0 0
    %1023 = vmatpush1.bf16.msra.mxu0 0
    %1024 = vmatprep.subr.bf16.mxu0 0
    %1025 = vmatpush1.bf16.msra.mxu0 0
    %1026 = vmatprep.subr.bf16.mxu0 0
    %1027 = vmatpush1.bf16.msra.mxu0 0
    %1028 = vmatprep.subr.bf16.mxu0 0
    %1029 = vmatpush1.bf16.msra.mxu0 0
    %1030 = vmatprep.subr.bf16.mxu0 0
    %1031 = vmatpush1.bf16.msra.mxu0 0
    %1032 = vmatprep.subr.bf16.mxu0 0
    %1033 = vmatpush1.bf16.msra.mxu0 0
    %1034 = vmatprep.subr.bf16.mxu0 0
    %1035 = vmatpush1.bf16.msra.mxu0 0
    %1036 = vmatprep.subr.bf16.mxu0 0
    %1037 = vmatpush1.bf16.msra.mxu0 0
    %1038 = vmatprep.mubr.bf16.mxu0 0
    %1039 = vmatmul.mubr.bf16.gmra.mrb[0].mxu0 %v1005
    %v1040 = vpop.f32.mrb[0].mxu0
    %v1041 = vadd.f32 0.0, %v1040
    %v1042 = vpop.f32.mrb[0].mxu0
    %v1043 = vadd.f32 0.0, %v1042
    %v1044 = vpop.f32.mrb[0].mxu0
    %v1045 = vpop.f32.mrb[0].mxu0
    %1046 = vdwg.mxu0
    %1047 = vmatprep.subr.bf16.mxu0 %v458
    %1048 = vmatpush1.bf16.msra.mxu0 %v457
    %1049 = vmatprep.subr.bf16.mxu0 %v462
    %1050 = vmatpush1.bf16.msra.mxu0 %v461
    %1051 = vmatprep.subr.bf16.mxu0 %v466
    %1052 = vmatpush1.bf16.msra.mxu0 %v465
    %1053 = vmatprep.subr.bf16.mxu0 %v470
    %1054 = vmatpush1.bf16.msra.mxu0 %v469
    %1055 = vmatprep.subr.bf16.mxu0 %v474
    %1056 = vmatpush1.bf16.msra.mxu0 %v473
    %1057 = vmatprep.subr.bf16.mxu0 %v478
    %1058 = vmatpush1.bf16.msra.mxu0 %v477
    %1059 = vmatprep.subr.bf16.mxu0 %v482
    %1060 = vmatpush1.bf16.msra.mxu0 %v481
    %1061 = vmatprep.subr.bf16.mxu0 %v486
    %1062 = vmatpush1.bf16.msra.mxu0 %v485
    %1063 = vmatprep.subr.bf16.mxu0 0
    %1064 = vmatpush1.bf16.msra.mxu0 0
    %1065 = vmatprep.subr.bf16.mxu0 0
    %1066 = vmatpush1.bf16.msra.mxu0 0
    %1067 = vmatprep.subr.bf16.mxu0 0
    %1068 = vmatpush1.bf16.msra.mxu0 0
    %1069 = vmatprep.subr.bf16.mxu0 0
    %1070 = vmatpush1.bf16.msra.mxu0 0
    %1071 = vmatprep.subr.bf16.mxu0 0
    %1072 = vmatpush1.bf16.msra.mxu0 0
    %1073 = vmatprep.subr.bf16.mxu0 0
    %1074 = vmatpush1.bf16.msra.mxu0 0
    %1075 = vmatprep.subr.bf16.mxu0 0
    %1076 = vmatpush1.bf16.msra.mxu0 0
    %1077 = vmatprep.subr.bf16.mxu0 0
    %1078 = vmatpush1.bf16.msra.mxu0 0
    %1079 = vmatprep.mubr.bf16.mxu0 0
    %1080 = vmatmul.mubr.bf16.gmra.mrb[0].mxu0 %v1005
    %v1081 = vpop.f32.mrb[0].mxu0
    %v1082 = vadd.f32 0.0, %v1081
    %v1083 = vpop.f32.mrb[0].mxu0
    %v1084 = vadd.f32 0.0, %v1083
    %v1085 = vpop.f32.mrb[0].mxu0
    %v1086 = vpop.f32.mrb[0].mxu0
    %1087 = vdwg.mxu0
    %v1088 = vadd.f32 %v1001, %v1041
    %v1089 = vadd.f32 %v1002, %v1043
    %v1090 = vadd.f32 %v1003, %v1082
    %v1091 = vadd.f32 %v1004, %v1084
    %v1092 = vxor.u32 %v1088, 2147483648
    %v1093 = vmul.f32 %v1092, 1.442695
    %v1094 = vpow.pop %v1093
    %v1095 = vadd.f32 %v1094, 1.0
    %v1096 = vrcp.pop %v1095
    %v1097 = vmul.f32 1.0, %v1096
    %v1098 = vxor.u32 %v1089, 2147483648
    %v1099 = vmul.f32 %v1098, 1.442695
    %v1100 = vpow.pop %v1099
    %v1101 = vadd.f32 %v1100, 1.0
    %v1102 = vrcp.pop %v1101
    %v1103 = vmul.f32 1.0, %v1102
    %v1104 = vtanh.pop %v1090
    %v1105 = vxor.u32 %v1091, 2147483648
    %v1106 = vmul.f32 %v1105, 1.442695
    %v1107 = vpow.pop %v1106
    %v1108 = vadd.f32 %v1107, 1.0
    %v1109 = vrcp.pop %v1108
    %v1110 = vmul.f32 1.0, %v1109
    %v1111 = vmul.f32 %v1103, %v991
    %v1112 = vmul.f32 %v1097, %v1104
    %v1113 = vadd.f32 %v1111, %v1112
    %v1114 = vtanh.pop %v1113
    %v1115 = vmul.f32 %v1110, %v1114
    %s1116 = scalar_lea.vmem [#allocation3], 32
    %1117 = vst [vmem:[%s1116] sm:$0xff] %v1115
    %s1118 = scalar_lea.vmem [#allocation4], 24
    %1119 = vst [vmem:[%s1118] sm:$0xff] %v1115
    %s1120 = smul.u32 5, 4
    %s1121 = smul.addr %s1120, 8
    %s1122 = scalar_lea.vmem [#allocation2], %s1121
    %v1123 = vld [vmem:[%s1122] sm:$0xff]
    %v1124 = vld [vmem:[%s1122 + $0x8] sm:$0xff]
    %v1125 = vld [vmem:[%s1122 + $0x10] sm:$0xff]
    %v1126 = vld [vmem:[%s1122 + $0x18] sm:$0xff]
    %v1127 = vpack.c.bf16 %v1115, %v1115
    %1128 = vmatprep.subr.bf16.mxu0 %v456
    %1129 = vmatpush1.bf16.msra.mxu0 %v455
    %1130 = vmatprep.subr.bf16.mxu0 %v460
    %1131 = vmatpush1.bf16.msra.mxu0 %v459
    %1132 = vmatprep.subr.bf16.mxu0 %v464
    %1133 = vmatpush1.bf16.msra.mxu0 %v463
    %1134 = vmatprep.subr.bf16.mxu0 %v468
    %1135 = vmatpush1.bf16.msra.mxu0 %v467
    %1136 = vmatprep.subr.bf16.mxu0 %v472
    %1137 = vmatpush1.bf16.msra.mxu0 %v471
    %1138 = vmatprep.subr.bf16.mxu0 %v476
    %1139 = vmatpush1.bf16.msra.mxu0 %v475
    %1140 = vmatprep.subr.bf16.mxu0 %v480
    %1141 = vmatpush1.bf16.msra.mxu0 %v479
    %1142 = vmatprep.subr.bf16.mxu0 %v484
    %1143 = vmatpush1.bf16.msra.mxu0 %v483
    %1144 = vmatprep.subr.bf16.mxu0 0
    %1145 = vmatpush1.bf16.msra.mxu0 0
    %1146 = vmatprep.subr.bf16.mxu0 0
    %1147 = vmatpush1.bf16.msra.mxu0 0
    %1148 = vmatprep.subr.bf16.mxu0 0
    %1149 = vmatpush1.bf16.msra.mxu0 0
    %1150 = vmatprep.subr.bf16.mxu0 0
    %1151 = vmatpush1.bf16.msra.mxu0 0
    %1152 = vmatprep.subr.bf16.mxu0 0
    %1153 = vmatpush1.bf16.msra.mxu0 0
    %1154 = vmatprep.subr.bf16.mxu0 0
    %1155 = vmatpush1.bf16.msra.mxu0 0
    %1156 = vmatprep.subr.bf16.mxu0 0
    %1157 = vmatpush1.bf16.msra.mxu0 0
    %1158 = vmatprep.subr.bf16.mxu0 0
    %1159 = vmatpush1.bf16.msra.mxu0 0
    %1160 = vmatprep.mubr.bf16.mxu0 0
    %1161 = vmatmul.mubr.bf16.gmra.mrb[0].mxu0 %v1127
    %v1162 = vpop.f32.mrb[0].mxu0
    %v1163 = vadd.f32 0.0, %v1162
    %v1164 = vpop.f32.mrb[0].mxu0
    %v1165 = vadd.f32 0.0, %v1164
    %v1166 = vpop.f32.mrb[0].mxu0
    %v1167 = vpop.f32.mrb[0].mxu0
    %1168 = vdwg.mxu0
    %1169 = vmatprep.subr.bf16.mxu0 %v458
    %1170 = vmatpush1.bf16.msra.mxu0 %v457
    %1171 = vmatprep.subr.bf16.mxu0 %v462
    %1172 = vmatpush1.bf16.msra.mxu0 %v461
    %1173 = vmatprep.subr.bf16.mxu0 %v466
    %1174 = vmatpush1.bf16.msra.mxu0 %v465
    %1175 = vmatprep.subr.bf16.mxu0 %v470
    %1176 = vmatpush1.bf16.msra.mxu0 %v469
    %1177 = vmatprep.subr.bf16.mxu0 %v474
    %1178 = vmatpush1.bf16.msra.mxu0 %v473
    %1179 = vmatprep.subr.bf16.mxu0 %v478
    %1180 = vmatpush1.bf16.msra.mxu0 %v477
    %1181 = vmatprep.subr.bf16.mxu0 %v482
    %1182 = vmatpush1.bf16.msra.mxu0 %v481
    %1183 = vmatprep.subr.bf16.mxu0 %v486
    %1184 = vmatpush1.bf16.msra.mxu0 %v485
    %1185 = vmatprep.subr.bf16.mxu0 0
    %1186 = vmatpush1.bf16.msra.mxu0 0
    %1187 = vmatprep.subr.bf16.mxu0 0
    %1188 = vmatpush1.bf16.msra.mxu0 0
    %1189 = vmatprep.subr.bf16.mxu0 0
    %1190 = vmatpush1.bf16.msra.mxu0 0
    %1191 = vmatprep.subr.bf16.mxu0 0
    %1192 = vmatpush1.bf16.msra.mxu0 0
    %1193 = vmatprep.subr.bf16.mxu0 0
    %1194 = vmatpush1.bf16.msra.mxu0 0
    %1195 = vmatprep.subr.bf16.mxu0 0
    %1196 = vmatpush1.bf16.msra.mxu0 0
    %1197 = vmatprep.subr.bf16.mxu0 0
    %1198 = vmatpush1.bf16.msra.mxu0 0
    %1199 = vmatprep.subr.bf16.mxu0 0
    %1200 = vmatpush1.bf16.msra.mxu0 0
    %1201 = vmatprep.mubr.bf16.mxu0 0
    %1202 = vmatmul.mubr.bf16.gmra.mrb[0].mxu0 %v1127
    %v1203 = vpop.f32.mrb[0].mxu0
    %v1204 = vadd.f32 0.0, %v1203
    %v1205 = vpop.f32.mrb[0].mxu0
    %v1206 = vadd.f32 0.0, %v1205
    %v1207 = vpop.f32.mrb[0].mxu0
    %v1208 = vpop.f32.mrb[0].mxu0
    %1209 = vdwg.mxu0
    %v1210 = vadd.f32 %v1123, %v1163
    %v1211 = vadd.f32 %v1124, %v1165
    %v1212 = vadd.f32 %v1125, %v1204
    %v1213 = vadd.f32 %v1126, %v1206
    %v1214 = vxor.u32 %v1210, 2147483648
    %v1215 = vmul.f32 %v1214, 1.442695
    %v1216 = vpow.pop %v1215
    %v1217 = vadd.f32 %v1216, 1.0
    %v1218 = vrcp.pop %v1217
    %v1219 = vmul.f32 1.0, %v1218
    %v1220 = vxor.u32 %v1211, 2147483648
    %v1221 = vmul.f32 %v1220, 1.442695
    %v1222 = vpow.pop %v1221
    %v1223 = vadd.f32 %v1222, 1.0
    %v1224 = vrcp.pop %v1223
    %v1225 = vmul.f32 1.0, %v1224
    %v1226 = vtanh.pop %v1212
    %v1227 = vxor.u32 %v1213, 2147483648
    %v1228 = vmul.f32 %v1227, 1.442695
    %v1229 = vpow.pop %v1228
    %v1230 = vadd.f32 %v1229, 1.0
    %v1231 = vrcp.pop %v1230
    %v1232 = vmul.f32 1.0, %v1231
    %v1233 = vmul.f32 %v1225, %v1113
    %v1234 = vmul.f32 %v1219, %v1226
    %v1235 = vadd.f32 %v1233, %v1234
    %v1236 = vtanh.pop %v1235
    %v1237 = vmul.f32 %v1232, %v1236
    %s1238 = scalar_lea.vmem [#allocation3], 40
    %1239 = vst [vmem:[%s1238] sm:$0xff] %v1237
    %s1240 = scalar_lea.vmem [#allocation4], 16
    %1241 = vst [vmem:[%s1240] sm:$0xff] %v1237
    %s1242 = smul.u32 6, 4
    %s1243 = smul.addr %s1242, 8
    %s1244 = scalar_lea.vmem [#allocation2], %s1243
    %v1245 = vld [vmem:[%s1244] sm:$0xff]
    %v1246 = vld [vmem:[%s1244 + $0x8] sm:$0xff]
    %v1247 = vld [vmem:[%s1244 + $0x10] sm:$0xff]
    %v1248 = vld [vmem:[%s1244 + $0x18] sm:$0xff]
    %v1249 = vpack.c.bf16 %v1237, %v1237
    %1250 = vmatprep.subr.bf16.mxu0 %v456
    %1251 = vmatpush1.bf16.msra.mxu0 %v455
    %1252 = vmatprep.subr.bf16.mxu0 %v460
    %1253 = vmatpush1.bf16.msra.mxu0 %v459
    %1254 = vmatprep.subr.bf16.mxu0 %v464
    %1255 = vmatpush1.bf16.msra.mxu0 %v463
    %1256 = vmatprep.subr.bf16.mxu0 %v468
    %1257 = vmatpush1.bf16.msra.mxu0 %v467
    %1258 = vmatprep.subr.bf16.mxu0 %v472
    %1259 = vmatpush1.bf16.msra.mxu0 %v471
    %1260 = vmatprep.subr.bf16.mxu0 %v476
    %1261 = vmatpush1.bf16.msra.mxu0 %v475
    %1262 = vmatprep.subr.bf16.mxu0 %v480
    %1263 = vmatpush1.bf16.msra.mxu0 %v479
    %1264 = vmatprep.subr.bf16.mxu0 %v484
    %1265 = vmatpush1.bf16.msra.mxu0 %v483
    %1266 = vmatprep.subr.bf16.mxu0 0
    %1267 = vmatpush1.bf16.msra.mxu0 0
    %1268 = vmatprep.subr.bf16.mxu0 0
    %1269 = vmatpush1.bf16.msra.mxu0 0
    %1270 = vmatprep.subr.bf16.mxu0 0
    %1271 = vmatpush1.bf16.msra.mxu0 0
    %1272 = vmatprep.subr.bf16.mxu0 0
    %1273 = vmatpush1.bf16.msra.mxu0 0
    %1274 = vmatprep.subr.bf16.mxu0 0
    %1275 = vmatpush1.bf16.msra.mxu0 0
    %1276 = vmatprep.subr.bf16.mxu0 0
    %1277 = vmatpush1.bf16.msra.mxu0 0
    %1278 = vmatprep.subr.bf16.mxu0 0
    %1279 = vmatpush1.bf16.msra.mxu0 0
    %1280 = vmatprep.subr.bf16.mxu0 0
    %1281 = vmatpush1.bf16.msra.mxu0 0
    %1282 = vmatprep.mubr.bf16.mxu0 0
    %1283 = vmatmul.mubr.bf16.gmra.mrb[0].mxu0 %v1249
    %v1284 = vpop.f32.mrb[0].mxu0
    %v1285 = vadd.f32 0.0, %v1284
    %v1286 = vpop.f32.mrb[0].mxu0
    %v1287 = vadd.f32 0.0, %v1286
    %v1288 = vpop.f32.mrb[0].mxu0
    %v1289 = vpop.f32.mrb[0].mxu0
    %1290 = vdwg.mxu0
    %1291 = vmatprep.subr.bf16.mxu0 %v458
    %1292 = vmatpush1.bf16.msra.mxu0 %v457
    %1293 = vmatprep.subr.bf16.mxu0 %v462
    %1294 = vmatpush1.bf16.msra.mxu0 %v461
    %1295 = vmatprep.subr.bf16.mxu0 %v466
    %1296 = vmatpush1.bf16.msra.mxu0 %v465
    %1297 = vmatprep.subr.bf16.mxu0 %v470
    %1298 = vmatpush1.bf16.msra.mxu0 %v469
    %1299 = vmatprep.subr.bf16.mxu0 %v474
    %1300 = vmatpush1.bf16.msra.mxu0 %v473
    %1301 = vmatprep.subr.bf16.mxu0 %v478
    %1302 = vmatpush1.bf16.msra.mxu0 %v477
    %1303 = vmatprep.subr.bf16.mxu0 %v482
    %1304 = vmatpush1.bf16.msra.mxu0 %v481
    %1305 = vmatprep.subr.bf16.mxu0 %v486
    %1306 = vmatpush1.bf16.msra.mxu0 %v485
    %1307 = vmatprep.subr.bf16.mxu0 0
    %1308 = vmatpush1.bf16.msra.mxu0 0
    %1309 = vmatprep.subr.bf16.mxu0 0
    %1310 = vmatpush1.bf16.msra.mxu0 0
    %1311 = vmatprep.subr.bf16.mxu0 0
    %1312 = vmatpush1.bf16.msra.mxu0 0
    %1313 = vmatprep.subr.bf16.mxu0 0
    %1314 = vmatpush1.bf16.msra.mxu0 0
    %1315 = vmatprep.subr.bf16.mxu0 0
    %1316 = vmatpush1.bf16.msra.mxu0 0
    %1317 = vmatprep.subr.bf16.mxu0 0
    %1318 = vmatpush1.bf16.msra.mxu0 0
    %1319 = vmatprep.subr.bf16.mxu0 0
    %1320 = vmatpush1.bf16.msra.mxu0 0
    %1321 = vmatprep.subr.bf16.mxu0 0
    %1322 = vmatpush1.bf16.msra.mxu0 0
    %1323 = vmatprep.mubr.bf16.mxu0 0
    %1324 = vmatmul.mubr.bf16.gmra.mrb[0].mxu0 %v1249
    %v1325 = vpop.f32.mrb[0].mxu0
    %v1326 = vadd.f32 0.0, %v1325
    %v1327 = vpop.f32.mrb[0].mxu0
    %v1328 = vadd.f32 0.0, %v1327
    %v1329 = vpop.f32.mrb[0].mxu0
    %v1330 = vpop.f32.mrb[0].mxu0
    %1331 = vdwg.mxu0
    %v1332 = vadd.f32 %v1245, %v1285
    %v1333 = vadd.f32 %v1246, %v1287
    %v1334 = vadd.f32 %v1247, %v1326
    %v1335 = vadd.f32 %v1248, %v1328
    %v1336 = vxor.u32 %v1332, 2147483648
    %v1337 = vmul.f32 %v1336, 1.442695
    %v1338 = vpow.pop %v1337
    %v1339 = vadd.f32 %v1338, 1.0
    %v1340 = vrcp.pop %v1339
    %v1341 = vmul.f32 1.0, %v1340
    %v1342 = vxor.u32 %v1333, 2147483648
    %v1343 = vmul.f32 %v1342, 1.442695
    %v1344 = vpow.pop %v1343
    %v1345 = vadd.f32 %v1344, 1.0
    %v1346 = vrcp.pop %v1345
    %v1347 = vmul.f32 1.0, %v1346
    %v1348 = vtanh.pop %v1334
    %v1349 = vxor.u32 %v1335, 2147483648
    %v1350 = vmul.f32 %v1349, 1.442695
    %v1351 = vpow.pop %v1350
    %v1352 = vadd.f32 %v1351, 1.0
    %v1353 = vrcp.pop %v1352
    %v1354 = vmul.f32 1.0, %v1353
    %v1355 = vmul.f32 %v1347, %v1235
    %v1356 = vmul.f32 %v1341, %v1348
    %v1357 = vadd.f32 %v1355, %v1356
    %v1358 = vtanh.pop %v1357
    %v1359 = vmul.f32 %v1354, %v1358
    %s1360 = scalar_lea.vmem [#allocation3], 48
    %1361 = vst [vmem:[%s1360] sm:$0xff] %v1359
    %s1362 = scalar_lea.vmem [#allocation4], 8
    %1363 = vst [vmem:[%s1362] sm:$0xff] %v1359
    %s1364 = smul.u32 7, 4
    %s1365 = smul.addr %s1364, 8
    %s1366 = scalar_lea.vmem [#allocation2], %s1365
    %v1367 = vld [vmem:[%s1366] sm:$0xff]
    %v1368 = vld [vmem:[%s1366 + $0x8] sm:$0xff]
    %v1369 = vld [vmem:[%s1366 + $0x10] sm:$0xff]
    %v1370 = vld [vmem:[%s1366 + $0x18] sm:$0xff]
    %v1371 = vpack.c.bf16 %v1359, %v1359
    %1372 = vmatprep.subr.bf16.mxu0 %v456
    %1373 = vmatpush1.bf16.msra.mxu0 %v455
    %1374 = vmatprep.subr.bf16.mxu0 %v460
    %1375 = vmatpush1.bf16.msra.mxu0 %v459
    %1376 = vmatprep.subr.bf16.mxu0 %v464
    %1377 = vmatpush1.bf16.msra.mxu0 %v463
    %1378 = vmatprep.subr.bf16.mxu0 %v468
    %1379 = vmatpush1.bf16.msra.mxu0 %v467
    %1380 = vmatprep.subr.bf16.mxu0 %v472
    %1381 = vmatpush1.bf16.msra.mxu0 %v471
    %1382 = vmatprep.subr.bf16.mxu0 %v476
    %1383 = vmatpush1.bf16.msra.mxu0 %v475
    %1384 = vmatprep.subr.bf16.mxu0 %v480
    %1385 = vmatpush1.bf16.msra.mxu0 %v479
    %1386 = vmatprep.subr.bf16.mxu0 %v484
    %1387 = vmatpush1.bf16.msra.mxu0 %v483
    %1388 = vmatprep.subr.bf16.mxu0 0
    %1389 = vmatpush1.bf16.msra.mxu0 0
    %1390 = vmatprep.subr.bf16.mxu0 0
    %1391 = vmatpush1.bf16.msra.mxu0 0
    %1392 = vmatprep.subr.bf16.mxu0 0
    %1393 = vmatpush1.bf16.msra.mxu0 0
    %1394 = vmatprep.subr.bf16.mxu0 0
    %1395 = vmatpush1.bf16.msra.mxu0 0
    %1396 = vmatprep.subr.bf16.mxu0 0
    %1397 = vmatpush1.bf16.msra.mxu0 0
    %1398 = vmatprep.subr.bf16.mxu0 0
    %1399 = vmatpush1.bf16.msra.mxu0 0
    %1400 = vmatprep.subr.bf16.mxu0 0
    %1401 = vmatpush1.bf16.msra.mxu0 0
    %1402 = vmatprep.subr.bf16.mxu0 0
    %1403 = vmatpush1.bf16.msra.mxu0 0
    %1404 = vmatprep.mubr.bf16.mxu0 0
    %1405 = vmatmul.mubr.bf16.gmra.mrb[0].mxu0 %v1371
    %v1406 = vpop.f32.mrb[0].mxu0
    %v1407 = vadd.f32 0.0, %v1406
    %v1408 = vpop.f32.mrb[0].mxu0
    %v1409 = vadd.f32 0.0, %v1408
    %v1410 = vpop.f32.mrb[0].mxu0
    %v1411 = vpop.f32.mrb[0].mxu0
    %1412 = vdwg.mxu0
    %1413 = vmatprep.subr.bf16.mxu0 %v458
    %1414 = vmatpush1.bf16.msra.mxu0 %v457
    %1415 = vmatprep.subr.bf16.mxu0 %v462
    %1416 = vmatpush1.bf16.msra.mxu0 %v461
    %1417 = vmatprep.subr.bf16.mxu0 %v466
    %1418 = vmatpush1.bf16.msra.mxu0 %v465
    %1419 = vmatprep.subr.bf16.mxu0 %v470
    %1420 = vmatpush1.bf16.msra.mxu0 %v469
    %1421 = vmatprep.subr.bf16.mxu0 %v474
    %1422 = vmatpush1.bf16.msra.mxu0 %v473
    %1423 = vmatprep.subr.bf16.mxu0 %v478
    %1424 = vmatpush1.bf16.msra.mxu0 %v477
    %1425 = vmatprep.subr.bf16.mxu0 %v482
    %1426 = vmatpush1.bf16.msra.mxu0 %v481
    %1427 = vmatprep.subr.bf16.mxu0 %v486
    %1428 = vmatpush1.bf16.msra.mxu0 %v485
    %1429 = vmatprep.subr.bf16.mxu0 0
    %1430 = vmatpush1.bf16.msra.mxu0 0
    %1431 = vmatprep.subr.bf16.mxu0 0
    %1432 = vmatpush1.bf16.msra.mxu0 0
    %1433 = vmatprep.subr.bf16.mxu0 0
    %1434 = vmatpush1.bf16.msra.mxu0 0
    %1435 = vmatprep.subr.bf16.mxu0 0
    %1436 = vmatpush1.bf16.msra.mxu0 0
    %1437 = vmatprep.subr.bf16.mxu0 0
    %1438 = vmatpush1.bf16.msra.mxu0 0
    %1439 = vmatprep.subr.bf16.mxu0 0
    %1440 = vmatpush1.bf16.msra.mxu0 0
    %1441 = vmatprep.subr.bf16.mxu0 0
    %1442 = vmatpush1.bf16.msra.mxu0 0
    %1443 = vmatprep.subr.bf16.mxu0 0
    %1444 = vmatpush1.bf16.msra.mxu0 0
    %1445 = vmatprep.mubr.bf16.mxu0 0
    %1446 = vmatmul.mubr.bf16.gmra.mrb[0].mxu0 %v1371
    %v1447 = vpop.f32.mrb[0].mxu0
    %v1448 = vadd.f32 0.0, %v1447
    %v1449 = vpop.f32.mrb[0].mxu0
    %v1450 = vadd.f32 0.0, %v1449
    %v1451 = vpop.f32.mrb[0].mxu0
    %v1452 = vpop.f32.mrb[0].mxu0
    %1453 = vdwg.mxu0
    %v1454 = vadd.f32 %v1367, %v1407
    %v1455 = vadd.f32 %v1368, %v1409
    %v1456 = vadd.f32 %v1369, %v1448
    %v1457 = vadd.f32 %v1370, %v1450
    %v1458 = vxor.u32 %v1454, 2147483648
    %v1459 = vmul.f32 %v1458, 1.442695
    %v1460 = vpow.pop %v1459
    %v1461 = vadd.f32 %v1460, 1.0
    %v1462 = vrcp.pop %v1461
    %v1463 = vmul.f32 1.0, %v1462
    %v1464 = vxor.u32 %v1455, 2147483648
    %v1465 = vmul.f32 %v1464, 1.442695
    %v1466 = vpow.pop %v1465
    %v1467 = vadd.f32 %v1466, 1.0
    %v1468 = vrcp.pop %v1467
    %v1469 = vmul.f32 1.0, %v1468
    %v1470 = vtanh.pop %v1456
    %v1471 = vxor.u32 %v1457, 2147483648
    %v1472 = vmul.f32 %v1471, 1.442695
    %v1473 = vpow.pop %v1472
    %v1474 = vadd.f32 %v1473, 1.0
    %v1475 = vrcp.pop %v1474
    %v1476 = vmul.f32 1.0, %v1475
    %v1477 = vmul.f32 %v1469, %v1357
    %v1478 = vmul.f32 %v1463, %v1470
    %v1479 = vadd.f32 %v1477, %v1478
    %v1480 = vtanh.pop %v1479
    %v1481 = vmul.f32 %v1476, %v1480
    %s1482 = scalar_lea.vmem [#allocation3], 56
    %1483 = vst [vmem:[%s1482] sm:$0xff] %v1481
    %1484 = vst [vmem:[#allocation4] sm:$0xff] %v1481
    %v1485 = vld [vmem:[#allocation3] sm:$0xff]
    %v1486 = vld [vmem:[#allocation3 + $0x8] sm:$0xff]
    %v1487 = vld [vmem:[#allocation3 + $0x10] sm:$0xff]
    %v1488 = vld [vmem:[#allocation3 + $0x18] sm:$0xff]
    %v1489 = vld [vmem:[#allocation3 + $0x20] sm:$0xff]
    %v1490 = vld [vmem:[#allocation3 + $0x28] sm:$0xff]
    %v1491 = vld [vmem:[#allocation3 + $0x30] sm:$0xff]
    %v1492 = vld [vmem:[#allocation3 + $0x38] sm:$0xff]
    %v1493 = vld [vmem:[%s4] sm:$0xff]
    %v1494 = vld [vmem:[%s4 + $0x8] sm:$0xff]
    %v1495 = vld [vmem:[%s4 + $0x10] sm:$0xff]
    %v1496 = vld [vmem:[%s4 + $0x18] sm:$0xff]
    %v1497 = vld [vmem:[%s4 + $0x20] sm:$0xff]
    %v1498 = vld [vmem:[%s4 + $0x28] sm:$0xff]
    %v1499 = vld [vmem:[%s4 + $0x30] sm:$0xff]
    %v1500 = vld [vmem:[%s4 + $0x38] sm:$0xff]
    %v1501 = vld [vmem:[%s4 + $0x40] sm:$0xff]
    %v1502 = vld [vmem:[%s4 + $0x48] sm:$0xff]
    %v1503 = vld [vmem:[%s4 + $0x50] sm:$0xff]
    %v1504 = vld [vmem:[%s4 + $0x58] sm:$0xff]
    %v1505 = vld [vmem:[%s4 + $0x60] sm:$0xff]
    %v1506 = vld [vmem:[%s4 + $0x68] sm:$0xff]
    %v1507 = vld [vmem:[%s4 + $0x70] sm:$0xff]
    %v1508 = vld [vmem:[%s4 + $0x78] sm:$0xff]
    %v1509 = vld [vmem:[#allocation4] sm:$0xff]
    %v1510 = vld [vmem:[#allocation4 + $0x8] sm:$0xff]
    %v1511 = vld [vmem:[#allocation4 + $0x10] sm:$0xff]
    %v1512 = vld [vmem:[#allocation4 + $0x18] sm:$0xff]
    %v1513 = vld [vmem:[#allocation4 + $0x20] sm:$0xff]
    %v1514 = vld [vmem:[#allocation4 + $0x28] sm:$0xff]
    %v1515 = vld [vmem:[#allocation4 + $0x30] sm:$0xff]
    %v1516 = vld [vmem:[#allocation4 + $0x38] sm:$0xff]
    %v1517 = vld [vmem:[#allocation7] sm:$0xff]
    %v1518 = vld [vmem:[#allocation7 + $0x8] sm:$0xff]
    %v1519 = vld [vmem:[#allocation7 + $0x10] sm:$0xff]
    %v1520 = vld [vmem:[#allocation7 + $0x18] sm:$0xff]
    %v1521 = vld [vmem:[#allocation7 + $0x20] sm:$0xff]
    %v1522 = vld [vmem:[#allocation7 + $0x28] sm:$0xff]
    %v1523 = vld [vmem:[#allocation7 + $0x30] sm:$0xff]
    %v1524 = vld [vmem:[#allocation7 + $0x38] sm:$0xff]
    %v1525 = vld [vmem:[#allocation7 + $0x40] sm:$0xff]
    %v1526 = vld [vmem:[#allocation7 + $0x48] sm:$0xff]
    %v1527 = vld [vmem:[#allocation7 + $0x50] sm:$0xff]
    %v1528 = vld [vmem:[#allocation7 + $0x58] sm:$0xff]
    %v1529 = vld [vmem:[#allocation7 + $0x60] sm:$0xff]
    %v1530 = vld [vmem:[#allocation7 + $0x68] sm:$0xff]
    %v1531 = vld [vmem:[#allocation7 + $0x70] sm:$0xff]
    %v1532 = vld [vmem:[#allocation7 + $0x78] sm:$0xff]
    %1533 = vmatprep.subr.mxu0 0.0
    %1534 = vmatpush1.msra.mxu0 %v1517
    %1535 = vmatprep.subr.mxu0 0.0
    %1536 = vmatpush1.msra.mxu0 %v1518
    %1537 = vmatprep.subr.mxu0 0.0
    %1538 = vmatpush1.msra.mxu0 %v1519
    %1539 = vmatprep.subr.mxu0 0.0
    %1540 = vmatpush1.msra.mxu0 %v1520
    %1541 = vmatprep.subr.mxu0 0.0
    %1542 = vmatpush1.msra.mxu0 %v1521
    %1543 = vmatprep.subr.mxu0 0.0
    %1544 = vmatpush1.msra.mxu0 %v1522
    %1545 = vmatprep.subr.mxu0 0.0
    %1546 = vmatpush1.msra.mxu0 %v1523
    %1547 = vmatprep.subr.mxu0 0.0
    %1548 = vmatpush1.msra.mxu0 %v1524
    %1549 = vmatprep.subr.mxu0 0.0
    %1550 = vmatpush1.msra.mxu0 %v1525
    %1551 = vmatprep.subr.mxu0 0.0
    %1552 = vmatpush1.msra.mxu0 %v1526
    %1553 = vmatprep.subr.mxu0 0.0
    %1554 = vmatpush1.msra.mxu0 %v1527
    %1555 = vmatprep.subr.mxu0 0.0
    %1556 = vmatpush1.msra.mxu0 %v1528
    %1557 = vmatprep.subr.mxu0 0.0
    %1558 = vmatpush1.msra.mxu0 %v1529
    %1559 = vmatprep.subr.mxu0 0.0
    %1560 = vmatpush1.msra.mxu0 %v1530
    %1561 = vmatprep.subr.mxu0 0.0
    %1562 = vmatpush1.msra.mxu0 %v1531
    %1563 = vmatprep.subr.mxu0 0.0
    %1564 = vmatpush1.msra.mxu0 %v1532
    %1565 = vmatprep.subr.mxu0 0.0
    %1566 = vmatpush1.msra.mxu0 0.0
    %1567 = vmatprep.subr.mxu0 0.0
    %1568 = vmatpush1.msra.mxu0 0.0
    %1569 = vmatprep.subr.mxu0 0.0
    %1570 = vmatpush1.msra.mxu0 0.0
    %1571 = vmatprep.subr.mxu0 0.0
    %1572 = vmatpush1.msra.mxu0 0.0
    %1573 = vmatprep.subr.mxu0 0.0
    %1574 = vmatpush1.msra.mxu0 0.0
    %1575 = vmatprep.subr.mxu0 0.0
    %1576 = vmatpush1.msra.mxu0 0.0
    %1577 = vmatprep.subr.mxu0 0.0
    %1578 = vmatpush1.msra.mxu0 0.0
    %1579 = vmatprep.subr.mxu0 0.0
    %1580 = vmatpush1.msra.mxu0 0.0
    %1581 = vmatprep.subr.mxu0 0.0
    %1582 = vmatpush1.msra.mxu0 0.0
    %1583 = vmatprep.subr.mxu0 0.0
    %1584 = vmatpush1.msra.mxu0 0.0
    %1585 = vmatprep.subr.mxu0 0.0
    %1586 = vmatpush1.msra.mxu0 0.0
    %1587 = vmatprep.subr.mxu0 0.0
    %1588 = vmatpush1.msra.mxu0 0.0
    %1589 = vmatprep.subr.mxu0 0.0
    %1590 = vmatpush1.msra.mxu0 0.0
    %1591 = vmatprep.subr.mxu0 0.0
    %1592 = vmatpush1.msra.mxu0 0.0
    %1593 = vmatprep.subr.mxu0 0.0
    %1594 = vmatpush1.msra.mxu0 0.0
    %1595 = vmatprep.subr.mxu0 0.0
    %1596 = vmatpush1.msra.mxu0 0.0
    %1597 = vmatprep.mubr.f32.mxu0 0.0
    %1598 = vmatmul.mubr.f32.gmra.mrb[0].mxu0 %v1509
    %v1599 = vpop.f32.mrb[0].mxu0
    %v1600 = vadd.f32 0.0, %v1599
    %v1601 = vpop.f32.mrb[0].mxu0
    %1602 = vmatprep.mubr.f32.mxu0 0.0
    %1603 = vmatmul.mubr.f32.gmra.mrb[0].mxu0 %v1510
    %v1604 = vpop.f32.mrb[0].mxu0
    %v1605 = vadd.f32 0.0, %v1604
    %v1606 = vpop.f32.mrb[0].mxu0
    %1607 = vmatprep.mubr.f32.mxu0 0.0
    %1608 = vmatmul.mubr.f32.gmra.mrb[0].mxu0 %v1511
    %v1609 = vpop.f32.mrb[0].mxu0
    %v1610 = vadd.f32 0.0, %v1609
    %v1611 = vpop.f32.mrb[0].mxu0
    %1612 = vmatprep.mubr.f32.mxu0 0.0
    %1613 = vmatmul.mubr.f32.gmra.mrb[0].mxu0 %v1512
    %v1614 = vpop.f32.mrb[0].mxu0
    %v1615 = vadd.f32 0.0, %v1614
    %v1616 = vpop.f32.mrb[0].mxu0
    %1617 = vmatprep.mubr.f32.mxu0 0.0
    %1618 = vmatmul.mubr.f32.gmra.mrb[0].mxu0 %v1513
    %v1619 = vpop.f32.mrb[0].mxu0
    %v1620 = vadd.f32 0.0, %v1619
    %v1621 = vpop.f32.mrb[0].mxu0
    %1622 = vmatprep.mubr.f32.mxu0 0.0
    %1623 = vmatmul.mubr.f32.gmra.mrb[0].mxu0 %v1514
    %v1624 = vpop.f32.mrb[0].mxu0
    %v1625 = vadd.f32 0.0, %v1624
    %v1626 = vpop.f32.mrb[0].mxu0
    %1627 = vmatprep.mubr.f32.mxu0 0.0
    %1628 = vmatmul.mubr.f32.gmra.mrb[0].mxu0 %v1515
    %v1629 = vpop.f32.mrb[0].mxu0
    %v1630 = vadd.f32 0.0, %v1629
    %v1631 = vpop.f32.mrb[0].mxu0
    %1632 = vmatprep.mubr.f32.mxu0 0.0
    %1633 = vmatmul.mubr.f32.gmra.mrb[0].mxu0 %v1516
    %v1634 = vpop.f32.mrb[0].mxu0
    %v1635 = vadd.f32 0.0, %v1634
    %v1636 = vpop.f32.mrb[0].mxu0
    %1637 = vdwg.mxu0
    %1638 = vmatprep.subr.mxu0 0.0
    %1639 = vmatpush1.msra.mxu0 %v1493
    %1640 = vmatprep.subr.mxu0 0.0
    %1641 = vmatpush1.msra.mxu0 %v1494
    %1642 = vmatprep.subr.mxu0 0.0
    %1643 = vmatpush1.msra.mxu0 %v1495
    %1644 = vmatprep.subr.mxu0 0.0
    %1645 = vmatpush1.msra.mxu0 %v1496
    %1646 = vmatprep.subr.mxu0 0.0
    %1647 = vmatpush1.msra.mxu0 %v1497
    %1648 = vmatprep.subr.mxu0 0.0
    %1649 = vmatpush1.msra.mxu0 %v1498
    %1650 = vmatprep.subr.mxu0 0.0
    %1651 = vmatpush1.msra.mxu0 %v1499
    %1652 = vmatprep.subr.mxu0 0.0
    %1653 = vmatpush1.msra.mxu0 %v1500
    %1654 = vmatprep.subr.mxu0 0.0
    %1655 = vmatpush1.msra.mxu0 %v1501
    %1656 = vmatprep.subr.mxu0 0.0
    %1657 = vmatpush1.msra.mxu0 %v1502
    %1658 = vmatprep.subr.mxu0 0.0
    %1659 = vmatpush1.msra.mxu0 %v1503
    %1660 = vmatprep.subr.mxu0 0.0
    %1661 = vmatpush1.msra.mxu0 %v1504
    %1662 = vmatprep.subr.mxu0 0.0
    %1663 = vmatpush1.msra.mxu0 %v1505
    %1664 = vmatprep.subr.mxu0 0.0
    %1665 = vmatpush1.msra.mxu0 %v1506
    %1666 = vmatprep.subr.mxu0 0.0
    %1667 = vmatpush1.msra.mxu0 %v1507
    %1668 = vmatprep.subr.mxu0 0.0
    %1669 = vmatpush1.msra.mxu0 %v1508
    %1670 = vmatprep.subr.mxu0 0.0
    %1671 = vmatpush1.msra.mxu0 0.0
    %1672 = vmatprep.subr.mxu0 0.0
    %1673 = vmatpush1.msra.mxu0 0.0
    %1674 = vmatprep.subr.mxu0 0.0
    %1675 = vmatpush1.msra.mxu0 0.0
    %1676 = vmatprep.subr.mxu0 0.0
    %1677 = vmatpush1.msra.mxu0 0.0
    %1678 = vmatprep.subr.mxu0 0.0
    %1679 = vmatpush1.msra.mxu0 0.0
    %1680 = vmatprep.subr.mxu0 0.0
    %1681 = vmatpush1.msra.mxu0 0.0
    %1682 = vmatprep.subr.mxu0 0.0
    %1683 = vmatpush1.msra.mxu0 0.0
    %1684 = vmatprep.subr.mxu0 0.0
    %1685 = vmatpush1.msra.mxu0 0.0
    %1686 = vmatprep.subr.mxu0 0.0
    %1687 = vmatpush1.msra.mxu0 0.0
    %1688 = vmatprep.subr.mxu0 0.0
    %1689 = vmatpush1.msra.mxu0 0.0
    %1690 = vmatprep.subr.mxu0 0.0
    %1691 = vmatpush1.msra.mxu0 0.0
    %1692 = vmatprep.subr.mxu0 0.0
    %1693 = vmatpush1.msra.mxu0 0.0
    %1694 = vmatprep.subr.mxu0 0.0
    %1695 = vmatpush1.msra.mxu0 0.0
    %1696 = vmatprep.subr.mxu0 0.0
    %1697 = vmatpush1.msra.mxu0 0.0
    %1698 = vmatprep.subr.mxu0 0.0
    %1699 = vmatpush1.msra.mxu0 0.0
    %1700 = vmatprep.subr.mxu0 0.0
    %1701 = vmatpush1.msra.mxu0 0.0
    %1702 = vmatprep.mubr.f32.mxu0 0.0
    %1703 = vmatmul.mubr.f32.gmra.mrb[0].mxu0 %v1485
    %v1704 = vpop.f32.mrb[0].mxu0
    %v1705 = vadd.f32 %v1600, %v1704
    %v1706 = vpop.f32.mrb[0].mxu0
    %1707 = vmatprep.mubr.f32.mxu0 0.0
    %1708 = vmatmul.mubr.f32.gmra.mrb[0].mxu0 %v1486
    %v1709 = vpop.f32.mrb[0].mxu0
    %v1710 = vadd.f32 %v1605, %v1709
    %v1711 = vpop.f32.mrb[0].mxu0
    %1712 = vmatprep.mubr.f32.mxu0 0.0
    %1713 = vmatmul.mubr.f32.gmra.mrb[0].mxu0 %v1487
    %v1714 = vpop.f32.mrb[0].mxu0
    %v1715 = vadd.f32 %v1610, %v1714
    %v1716 = vpop.f32.mrb[0].mxu0
    %1717 = vmatprep.mubr.f32.mxu0 0.0
    %1718 = vmatmul.mubr.f32.gmra.mrb[0].mxu0 %v1488
    %v1719 = vpop.f32.mrb[0].mxu0
    %v1720 = vadd.f32 %v1615, %v1719
    %v1721 = vpop.f32.mrb[0].mxu0
    %1722 = vmatprep.mubr.f32.mxu0 0.0
    %1723 = vmatmul.mubr.f32.gmra.mrb[0].mxu0 %v1489
    %v1724 = vpop.f32.mrb[0].mxu0
    %v1725 = vadd.f32 %v1620, %v1724
    %v1726 = vpop.f32.mrb[0].mxu0
    %1727 = vmatprep.mubr.f32.mxu0 0.0
    %1728 = vmatmul.mubr.f32.gmra.mrb[0].mxu0 %v1490
    %v1729 = vpop.f32.mrb[0].mxu0
    %v1730 = vadd.f32 %v1625, %v1729
    %v1731 = vpop.f32.mrb[0].mxu0
    %1732 = vmatprep.mubr.f32.mxu0 0.0
    %1733 = vmatmul.mubr.f32.gmra.mrb[0].mxu0 %v1491
    %v1734 = vpop.f32.mrb[0].mxu0
    %v1735 = vadd.f32 %v1630, %v1734
    %v1736 = vpop.f32.mrb[0].mxu0
    %1737 = vmatprep.mubr.f32.mxu0 0.0
    %1738 = vmatmul.mubr.f32.gmra.mrb[0].mxu0 %v1492
    %v1739 = vpop.f32.mrb[0].mxu0
    %v1740 = vadd.f32 %v1635, %v1739
    %v1741 = vpop.f32.mrb[0].mxu0
    %1742 = vdwg.mxu0
    %v1743 = vld [vmem:[%s6] sm:$0x1]
    %v1745 = vlaneseq
    %v1746 = vshrl.u32 %v1745, 7
    %v1747 = vsub.s32 0, %v1746
    %v1748 = vrot.slane %v1743, %v1747
    %v1750 = vadd.f32 %v1705, %v1748
    %v1751 = vadd.f32 %v1710, %v1748
    %v1752 = vadd.f32 %v1715, %v1748
    %v1753 = vadd.f32 %v1720, %v1748
    %v1754 = vadd.f32 %v1725, %v1748
    %v1755 = vadd.f32 %v1730, %v1748
    %v1756 = vadd.f32 %v1735, %v1748
    %v1757 = vadd.f32 %v1740, %v1748
    %1758 = vmax.xlane.f32.xlu0 %v1750
    %v1759 = vpop.xlane.xlu0 %1758
    %1760 = vmax.xlane.f32.xlu0 %v1751
    %v1761 = vpop.xlane.xlu0 %1760
    %1762 = vmax.xlane.f32.xlu0 %v1752
    %v1763 = vpop.xlane.xlu0 %1762
    %1764 = vmax.xlane.f32.xlu0 %v1753
    %v1765 = vpop.xlane.xlu0 %1764
    %1766 = vmax.xlane.f32.xlu0 %v1754
    %v1767 = vpop.xlane.xlu0 %1766
    %1768 = vmax.xlane.f32.xlu0 %v1755
    %v1769 = vpop.xlane.xlu0 %1768
    %1770 = vmax.xlane.f32.xlu0 %v1756
    %v1771 = vpop.xlane.xlu0 %1770
    %1772 = vmax.xlane.f32.xlu0 %v1757
    %v1773 = vpop.xlane.xlu0 %1772
    %v1774 = vsub.f32 %v1750, %v1759
    %v1775 = vsub.f32 %v1751, %v1761
    %v1776 = vsub.f32 %v1752, %v1763
    %v1777 = vsub.f32 %v1753, %v1765
    %v1778 = vsub.f32 %v1754, %v1767
    %v1779 = vsub.f32 %v1755, %v1769
    %v1780 = vsub.f32 %v1756, %v1771
    %v1781 = vsub.f32 %v1757, %v1773
    %v1782 = vmul.f32 %v1774, 1.442695
    %v1783 = vpow.pop %v1782
    %v1784 = vmul.f32 %v1775, 1.442695
    %v1785 = vpow.pop %v1784
    %v1786 = vmul.f32 %v1776, 1.442695
    %v1787 = vpow.pop %v1786
    %v1788 = vmul.f32 %v1777, 1.442695
    %v1789 = vpow.pop %v1788
    %v1790 = vmul.f32 %v1778, 1.442695
    %v1791 = vpow.pop %v1790
    %v1792 = vmul.f32 %v1779, 1.442695
    %v1793 = vpow.pop %v1792
    %v1794 = vmul.f32 %v1780, 1.442695
    %v1795 = vpow.pop %v1794
    %v1796 = vmul.f32 %v1781, 1.442695
    %v1797 = vpow.pop %v1796
    %1798 = vadd.xlane.f32.xlu0 %v1783
    %v1799 = vpop.xlane.xlu0 %1798
    %1800 = vadd.xlane.f32.xlu0 %v1785
    %v1801 = vpop.xlane.xlu0 %1800
    %1802 = vadd.xlane.f32.xlu0 %v1787
    %v1803 = vpop.xlane.xlu0 %1802
    %1804 = vadd.xlane.f32.xlu0 %v1789
    %v1805 = vpop.xlane.xlu0 %1804
    %1806 = vadd.xlane.f32.xlu0 %v1791
    %v1807 = vpop.xlane.xlu0 %1806
    %1808 = vadd.xlane.f32.xlu0 %v1793
    %v1809 = vpop.xlane.xlu0 %1808
    %1810 = vadd.xlane.f32.xlu0 %v1795
    %v1811 = vpop.xlane.xlu0 %1810
    %1812 = vadd.xlane.f32.xlu0 %v1797
    %v1813 = vpop.xlane.xlu0 %1812
    %v1814 = vrcp.pop %v1799
    %v1815 = vrcp.pop %v1801
    %v1816 = vrcp.pop %v1803
    %v1817 = vrcp.pop %v1805
    %v1818 = vrcp.pop %v1807
    %v1819 = vrcp.pop %v1809
    %v1820 = vrcp.pop %v1811
    %v1821 = vrcp.pop %v1813
    %v1822 = vmul.f32 %v1783, %v1814
    %v1823 = vmul.f32 %v1785, %v1815
    %v1824 = vmul.f32 %v1787, %v1816
    %v1825 = vmul.f32 %v1789, %v1817
    %v1826 = vmul.f32 %v1791, %v1818
    %v1827 = vmul.f32 %v1793, %v1819
    %v1828 = vmul.f32 %v1795, %v1820
    %v1829 = vmul.f32 %v1797, %v1821
    %1830 = vst [vmem:[%s7] sm:$0xff] %v1822
    %1831 = vst [vmem:[%s7 + $0x8] sm:$0xff] %v1823
    %1832 = vst [vmem:[%s7 + $0x10] sm:$0xff] %v1824
    %1833 = vst [vmem:[%s7 + $0x18] sm:$0xff] %v1825
    %1834 = vst [vmem:[%s7 + $0x20] sm:$0xff] %v1826
    %1835 = vst [vmem:[%s7 + $0x28] sm:$0xff] %v1827
    %1836 = vst [vmem:[%s7 + $0x30] sm:$0xff] %v1828
    %1837 = vst [vmem:[%s7 + $0x38] sm:$0xff] %v1829
    // Predicated region
    $region38: #{pynet_forward.1} parent=1 // pred_check
      _
    $region39: #{pynet_forward.1} parent=1 // pred_check_branch
      %1839 = sbr.rel (0) target = $region41
    $region40: #{pynet_forward.1} parent=1 // pred_region
      _
    $region41: #{pynet_forward.1} parent=1 // pred_fallthru
      _
    // Predicated region
    $region42: #{pynet_forward.1} parent=1 // pred_check
      _
    $region43: #{pynet_forward.1} parent=1 // pred_check_branch
      %1841 = sbr.rel (0) target = $region45
    $region44: #{pynet_forward.1} parent=1 // pred_region
      _
    $region45: #{pynet_forward.1} parent=1 // pred_fallthru
      _
    %1842 = vsyncpa [#allocation6], 1
    %1843 = vsyncpa [#allocation8], 1

</llo_original>
